<compile_context>
chip_gen: v5e
topology: v5e:2x2
jax: 0.10.0
libtpu: 0.0.40
codegen_flags: <defaults>
</compile_context>

<pallas_src>
import jax
import jax.numpy as jnp
from jax import lax
from jax.experimental import pallas as pl
from jax.experimental.pallas import tpu as pltpu


def _make_mlp_kernel(num_layers):
    """Fused relu(W0@h + b0) ... W_last@h + b_last on one row tile.

    Ref layouts:
      x_ref  : (tile, in_dim)   row-major input block, native dtype
      w_i    : (d_out_i, d_in_i) bf16 (PyTorch-native layout, pre-cast)
      b_i    : (d_out_i, 1)      f32
      o_ref  : (out_dim, tile)   feature-major (lane-dense) output block
    """

    def kernel(*refs):
        x_ref = refs[0]
        o_ref = refs[-1]
        params = refs[1:-1]  # (w0, b0, w1, b1, ..., wL, bL)

        # Layer 0: contract the feature axis of BOTH operands; the small
        # (tile, in_dim) transpose happens in VMEM on the XLU (idle slot),
        # avoiding any wrapper-side HBM transpose of x.
        x_bf = x_ref[...].astype(jnp.bfloat16)            # (tile, in_dim)
        w0 = params[0][...]                               # (d0, in_dim) bf16
        b0 = params[1][...]                               # (d0, 1) f32
        acc = lax.dot_general(
            w0, x_bf,
            dimension_numbers=(((1,), (1,)), ((), ())),
            preferred_element_type=jnp.float32,
        ) + b0                                            # (d0, tile) f32

        for i in range(1, num_layers):
            # ReLU in the f32 accumulator, feed the next MXU pass in bf16
            # (halves intermediate VMEM bytes and MXU passes).
            h = jnp.maximum(acc, 0.0).astype(jnp.bfloat16)
            w = params[2 * i][...]                        # (d_out, d_in) bf16
            b = params[2 * i + 1][...]                    # (d_out, 1) f32
            acc = jnp.dot(w, h, preferred_element_type=jnp.float32) + b

        o_ref[...] = acc.astype(o_ref.dtype)

    return kernel


def _round_up(v, m):
    return ((v + m - 1) // m) * m


def mlp_forward(x, weights, biases, *, row_tile=4096, min_rows_for_pallas=1024):
    """Fused MLP forward.

    x:       (..., in_dim)
    weights: list of (d_out, d_in) arrays (PyTorch nn.Linear layout)
    biases:  list of (d_out,) arrays
    """
    num_layers = len(weights)
    out_dim = weights[-1].shape[0]

    lead_shape = x.shape[:-1]
    in_dim = x.shape[-1]
    x2d = x.reshape(-1, in_dim)
    n = x2d.shape[0]

    # ---- small-N fast path: let XLA fuse the tiny dot chain ---------------
    if n < min_rows_for_pallas:
        return mlp_reference(x2d, weights, biases).reshape(*lead_shape, out_dim)

    # ---- operand precision: bf16 into the MXU, f32 accumulate in-kernel ---
    weights_bf = [w.astype(jnp.bfloat16) for w in weights]
    biases_col = [b.reshape(-1, 1).astype(jnp.float32) for b in biases]

    # ---- lane-aligned tile; guarantee >= 2 grid steps (v7x megacore) ------
    tile = max(128, (row_tile // 128) * 128)
    if 2 * tile > n:
        tile = max(128, _round_up(pl.cdiv(n, 2), 128))
    grid = (pl.cdiv(n, tile),)   # ragged last block handled by Pallas

    # BlockSpecs: x tiled over rows (row-major blocks), output tiled over its
    # lane (N) axis, parameters resident (constant index_map).
    in_specs = [pl.BlockSpec((tile, in_dim), lambda i: (i, 0))]
    params_interleaved = []
    for w, b in zip(weights_bf, biases_col):
        in_specs.append(pl.BlockSpec(w.shape, lambda i: (0, 0)))
        in_specs.append(pl.BlockSpec(b.shape, lambda i: (0, 0)))
        params_interleaved += [w, b]
    out_spec = pl.BlockSpec((out_dim, tile), lambda i: (0, i))

    kernel = _make_mlp_kernel(num_layers)

    # Per-step VMEM at tile=4096: ~1 MiB input + ~0.5 MiB output (double
    # buffered) + <1 MiB bf16 intermediates -- far under v7x's 64 MiB.
    # TODO(synk): if row_tile grows to ~16K+ or hidden dims grow, set
    # vmem_limit_bytes explicitly and re-derive the budget against 64 MiB.
    outT = pl.pallas_call(
        kernel,
        out_shape=jax.ShapeDtypeStruct((out_dim, n), x.dtype),
        grid_spec=pltpu.PrefetchScalarGridSpec(
            num_scalar_prefetch=0,
            grid=grid,
            in_specs=in_specs,
            out_specs=out_spec,
        ),
        compiler_params=pltpu.CompilerParams(
            dimension_semantics=("parallel",),
        ),
    )(x2d, *params_interleaved)

    # Only remaining layout plumbing: (out_dim, n) -> (n, out_dim).
    return outT.T.reshape(*lead_shape, out_dim)


def init_mlp_params(key, in_dim, out_dim, hidden_list, dtype=jnp.float32):
    """Deterministic init mirroring nn.Linear's default U(-1/sqrt(fan_in), .).

    Weights are stored in PyTorch-native (d_out, d_in) layout.
    """
    dims = [in_dim] + list(hidden_list) + [out_dim]
    weights, biases = [], []
    for d_in, d_out in zip(dims[:-1], dims[1:]):
        key, kw, kb = jax.random.split(key, 3)
        bound = 1.0 / jnp.sqrt(jnp.asarray(d_in, dtype))
        w = jax.random.uniform(kw, (d_out, d_in), dtype, -bound, bound)
        b = jax.random.uniform(kb, (d_out,), dtype, -bound, bound)
        weights.append(w)
        biases.append(b)
    return weights, biases


def mlp_reference(x, weights, biases):
    """Pure-JAX f32 reference matching the PyTorch forward (x @ W.T + b)."""
    h = x
    for i, (w, b) in enumerate(zip(weights, biases)):
        h = h @ w.T + b
        if i < len(weights) - 1:
            h = jnp.maximum(h, 0.0)
    return h


if __name__ == "__main__":
    key = jax.random.PRNGKey(0)

    # Shapes consistent with an implicit-head MLP (per-query coordinates).
    in_dim, out_dim = 32, 16
    hidden_list = [64, 64]

    kx, kp, kx2, kx3 = jax.random.split(key, 4)
    weights, biases = init_mlp_params(kp, in_dim, out_dim, hidden_list)

    # 1) Small N -> XLA fast path through the same wrapper (N=120 rows).
    x_small = jax.random.normal(kx, (2, 60, in_dim), dtype=jnp.float32)
    out_small = jax.block_until_ready(mlp_forward(x_small, weights, biases))
    ref_small = mlp_reference(x_small.reshape(-1, in_dim), weights, biases)
    ref_small = ref_small.reshape(2, 60, out_dim)
    assert out_small.shape == (2, 60, out_dim)
    assert jnp.allclose(out_small, ref_small, atol=1e-4, rtol=1e-4), "mismatch (small)"

    # 2) Pallas path, tile-aligned N; the >=2-step cap gives 2 parallel steps.
    x_big = jax.random.normal(kx2, (4096, in_dim), dtype=jnp.float32)
    out_big = jax.block_until_ready(mlp_forward(x_big, weights, biases))
    ref_big = mlp_reference(x_big, weights, biases)
    assert out_big.shape == (4096, out_dim)
    # bf16-operand / f32-accumulate vs f32 reference: relaxed tolerance.
    assert jnp.allclose(out_big, ref_big, atol=3e-2, rtol=3e-2), "mismatch (big)"

    # 3) Pallas path, ragged last block (N=3000, tile=1024 -> 3 steps).
    x_rag = jax.random.normal(kx3, (3000, in_dim), dtype=jnp.float32)
    out_rag = jax.block_until_ready(
        mlp_forward(x_rag, weights, biases, row_tile=1024))
    ref_rag = mlp_reference(x_rag, weights, biases)
    assert out_rag.shape == (3000, out_dim)
    assert jnp.allclose(out_rag, ref_rag, atol=3e-2, rtol=3e-2), "mismatch (ragged)"

    print("KERNEL_OK")
</pallas_src>

<mosaic_0001>
module attributes {stable_mosaic.version = 11 : i64} {
  func.func @kernel(%arg0: i32, %arg1: memref<2048x32xf32, #tpu.memory_space<vmem>>, %arg2: memref<64x32xbf16, #tpu.memory_space<vmem>>, %arg3: memref<64x1xf32, #tpu.memory_space<vmem>>, %arg4: memref<64x64xbf16, #tpu.memory_space<vmem>>, %arg5: memref<64x1xf32, #tpu.memory_space<vmem>>, %arg6: memref<16x64xbf16, #tpu.memory_space<vmem>>, %arg7: memref<16x1xf32, #tpu.memory_space<vmem>>, %arg8: memref<16x2048xf32, #tpu.memory_space<vmem>>) attributes {dimension_semantics = [#tpu.dimension_semantics<parallel>], iteration_bounds = array<i64: 2>, scalar_prefetch = 0 : i64, scratch_operands = 0 : i64, tpu.core_type = #tpu.core_type<tc>, window_params = [{transform_indices = @transform_0, window_bounds = array<i64: 2048, 32>}, {pipeline_mode = #tpu.pipeline_mode<synchronous>, transform_indices = @transform_1, window_bounds = array<i64: 64, 32>}, {pipeline_mode = #tpu.pipeline_mode<synchronous>, transform_indices = @transform_2, window_bounds = array<i64: 64, 1>}, {pipeline_mode = #tpu.pipeline_mode<synchronous>, transform_indices = @transform_3, window_bounds = array<i64: 64, 64>}, {pipeline_mode = #tpu.pipeline_mode<synchronous>, transform_indices = @transform_4, window_bounds = array<i64: 64, 1>}, {pipeline_mode = #tpu.pipeline_mode<synchronous>, transform_indices = @transform_5, window_bounds = array<i64: 16, 64>}, {pipeline_mode = #tpu.pipeline_mode<synchronous>, transform_indices = @transform_6, window_bounds = array<i64: 16, 1>}, {transform_indices = @transform_7, window_bounds = array<i64: 16, 2048>}]} {
    %c0 = arith.constant 0 : index
    %c0_0 = arith.constant 0 : index
    %0 = vector.load %arg1[%c0, %c0_0] : memref<2048x32xf32, #tpu.memory_space<vmem>>, vector<2048x32xf32>
    %1 = arith.truncf %0 : vector<2048x32xf32> to vector<2048x32xbf16>
    %c0_1 = arith.constant 0 : index
    %c0_2 = arith.constant 0 : index
    %2 = vector.load %arg2[%c0_1, %c0_2] : memref<64x32xbf16, #tpu.memory_space<vmem>>, vector<64x32xbf16>
    %c0_3 = arith.constant 0 : index
    %c0_4 = arith.constant 0 : index
    %3 = vector.load %arg3[%c0_3, %c0_4] : memref<64x1xf32, #tpu.memory_space<vmem>>, vector<64x1xf32>
    %cst = arith.constant dense<0.000000e+00> : vector<64x2048xf32>
    %4 = tpu.matmul %2, %1, %cst {dimension_numbers = #tpu.dot_dimension_numbers<[1], [1], [0], [0], [0, 0, 1, 0], [], []>} : vector<64x32xbf16>, vector<2048x32xbf16>, vector<64x2048xf32> -> vector<64x2048xf32>
    %5 = vector.broadcast %3 : vector<64x1xf32> to vector<64x2048xf32>
    %6 = arith.addf %4, %5 : vector<64x2048xf32>
    %cst_5 = arith.constant 0.000000e+00 : f32
    %7 = vector.broadcast %cst_5 : f32 to vector<64x2048xf32>
    %8 = arith.maximumf %6, %7 : vector<64x2048xf32>
    %9 = arith.truncf %8 : vector<64x2048xf32> to vector<64x2048xbf16>
    %c0_6 = arith.constant 0 : index
    %c0_7 = arith.constant 0 : index
    %10 = vector.load %arg4[%c0_6, %c0_7] : memref<64x64xbf16, #tpu.memory_space<vmem>>, vector<64x64xbf16>
    %c0_8 = arith.constant 0 : index
    %c0_9 = arith.constant 0 : index
    %11 = vector.load %arg5[%c0_8, %c0_9] : memref<64x1xf32, #tpu.memory_space<vmem>>, vector<64x1xf32>
    %cst_10 = arith.constant dense<0.000000e+00> : vector<64x2048xf32>
    %12 = tpu.matmul %10, %9, %cst_10 {dimension_numbers = #tpu.dot_dimension_numbers<[1], [0], [0], [1], [0, 0, 1, 1], [], []>} : vector<64x64xbf16>, vector<64x2048xbf16>, vector<64x2048xf32> -> vector<64x2048xf32>
    %13 = vector.broadcast %11 : vector<64x1xf32> to vector<64x2048xf32>
    %14 = arith.addf %12, %13 : vector<64x2048xf32>
    %cst_11 = arith.constant 0.000000e+00 : f32
    %15 = vector.broadcast %cst_11 : f32 to vector<64x2048xf32>
    %16 = arith.maximumf %14, %15 : vector<64x2048xf32>
    %17 = arith.truncf %16 : vector<64x2048xf32> to vector<64x2048xbf16>
    %c0_12 = arith.constant 0 : index
    %c0_13 = arith.constant 0 : index
    %18 = vector.load %arg6[%c0_12, %c0_13] : memref<16x64xbf16, #tpu.memory_space<vmem>>, vector<16x64xbf16>
    %c0_14 = arith.constant 0 : index
    %c0_15 = arith.constant 0 : index
    %19 = vector.load %arg7[%c0_14, %c0_15] : memref<16x1xf32, #tpu.memory_space<vmem>>, vector<16x1xf32>
    %cst_16 = arith.constant dense<0.000000e+00> : vector<16x2048xf32>
    %20 = tpu.matmul %18, %17, %cst_16 {dimension_numbers = #tpu.dot_dimension_numbers<[1], [0], [0], [1], [0, 0, 1, 1], [], []>} : vector<16x64xbf16>, vector<64x2048xbf16>, vector<16x2048xf32> -> vector<16x2048xf32>
    %21 = vector.broadcast %19 : vector<16x1xf32> to vector<16x2048xf32>
    %22 = arith.addf %20, %21 : vector<16x2048xf32>
    %c0_17 = arith.constant 0 : index
    %c0_18 = arith.constant 0 : index
    %23 = vector.load %arg8[%c0_17, %c0_18] : memref<16x2048xf32, #tpu.memory_space<vmem>>, vector<16x2048xf32>
    tpu.vector_store %arg8[%c0_17, %c0_18], %22 {strides = array<i32>} : memref<16x2048xf32, #tpu.memory_space<vmem>>, vector<16x2048xf32>,
    return
  }
  func.func @transform_0(%arg0: i32) -> (i32, i32) {
    %c0_i32 = arith.constant 0 : i32
    %c0_i32_0 = arith.constant 0 : i32
    return %arg0, %c0_i32 : i32, i32
  }
  func.func @transform_1(%arg0: i32) -> (i32, i32) {
    %c0_i32 = arith.constant 0 : i32
    %c0_i32_0 = arith.constant 0 : i32
    %c0_i32_1 = arith.constant 0 : i32
    return %c0_i32, %c0_i32_0 : i32, i32
  }
  func.func @transform_2(%arg0: i32) -> (i32, i32) {
    %c0_i32 = arith.constant 0 : i32
    %c0_i32_0 = arith.constant 0 : i32
    %c0_i32_1 = arith.constant 0 : i32
    return %c0_i32, %c0_i32_0 : i32, i32
  }
  func.func @transform_3(%arg0: i32) -> (i32, i32) {
    %c0_i32 = arith.constant 0 : i32
    %c0_i32_0 = arith.constant 0 : i32
    %c0_i32_1 = arith.constant 0 : i32
    return %c0_i32, %c0_i32_0 : i32, i32
  }
  func.func @transform_4(%arg0: i32) -> (i32, i32) {
    %c0_i32 = arith.constant 0 : i32
    %c0_i32_0 = arith.constant 0 : i32
    %c0_i32_1 = arith.constant 0 : i32
    return %c0_i32, %c0_i32_0 : i32, i32
  }
  func.func @transform_5(%arg0: i32) -> (i32, i32) {
    %c0_i32 = arith.constant 0 : i32
    %c0_i32_0 = arith.constant 0 : i32
    %c0_i32_1 = arith.constant 0 : i32
    return %c0_i32, %c0_i32_0 : i32, i32
  }
  func.func @transform_6(%arg0: i32) -> (i32, i32) {
    %c0_i32 = arith.constant 0 : i32
    %c0_i32_0 = arith.constant 0 : i32
    %c0_i32_1 = arith.constant 0 : i32
    return %c0_i32, %c0_i32_0 : i32, i32
  }
  func.func @transform_7(%arg0: i32) -> (i32, i32) {
    %c0_i32 = arith.constant 0 : i32
    %c0_i32_0 = arith.constant 0 : i32
    return %c0_i32, %arg0 : i32, i32
  }
}

</mosaic_0001>

<llo_original>
// kernel: tpu_custom_call.1
$region0: #{tpu_custom_call.1}
  #allocation0 [shape = 'u32[]', space=smem, size = 0x4, offset = 0x4, fixed_abs, tag = 'smem constant byte address 0x4 - core index']
  #allocation1 [shape = 'u32[72,128]{1,0:T(1,128)}', space=vmem, size = 0x9000, scoped, tag = 'internal scratch']
  %s0 = inlined_call_operand.vmem [shape: f32[4096,32], index: 0, kind: input, shape index: {}]
  %s1 = inlined_call_operand.vmem [shape: bf16[64,32], index: 1, kind: input, shape index: {}]
  %s2 = inlined_call_operand.vmem [shape: f32[64,1], index: 2, kind: input, shape index: {}]
  %s3 = inlined_call_operand.vmem [shape: bf16[64,64], index: 3, kind: input, shape index: {}]
  %s4 = inlined_call_operand.vmem [shape: f32[64,1], index: 4, kind: input, shape index: {}]
  %s5 = inlined_call_operand.vmem [shape: bf16[16,64], index: 5, kind: input, shape index: {}]
  %s6 = inlined_call_operand.vmem [shape: f32[16,1], index: 6, kind: input, shape index: {}]
  %s7 = inlined_call_operand.hbm [shape: f32[16,4096], index: 7, kind: output, shape index: {}]
  %s8 = sld [smem:[#allocation0]]
  $region61: #{tpu_custom_call.1} parent=0
    _
  %s10 = ssub.s32 1, %s8
  %s11 = scalar_select 0, %s10, %s8
  $region1: #{tpu_custom_call.1} parent=0
    #allocation2 [shape = 'u8[262144]{0}', space=vmem, size = 0x40000, scoped, tag = 'output window, operand 0']
    #allocation3 [shape = 's32[2]{0}', space=sflag, size = 0x8, scoped, tag = 'scoped memory for tpu_custom_call.1']
    %12 = vsyncpa [#allocation3], 0
    %s13 = scalar_lea.sflag [#allocation3], 1
    %14 = vsyncpa %s13, 0
    loop: start=0, step=1, limit=4
    $region2: #{tpu_custom_call.1} parent=1 // loop_pre_header
      _
    $region3: #{tpu_custom_call.1} parent=1 // loop_header
      %s16 = sphi 0, %s20
      %p17 = scmp.ge.s32.totalorder %s16, 4
      %s26 = sphi 0, %s28
      %s29 = sphi 0, %s26
      %s30 = sphi 0, %s29
      %s46 = sphi 0, %s30
      %s50 = sphi 0, %s50
      %s52 = sphi 0, %s50
      %s53 = sphi 0, %s52
      %s67 = sphi 0, %s53
      %s71 = sphi 0, %s71
      %s73 = sphi 0, %s71
      %s74 = sphi 0, %s73
      %s88 = sphi 0, %s74
      %s92 = sphi 0, %s92
      %s94 = sphi 0, %s92
      %s95 = sphi 0, %s94
      %s109 = sphi 0, %s95
      %s113 = sphi 0, %s113
      %s115 = sphi 0, %s113
      %s116 = sphi 0, %s115
      %s130 = sphi 0, %s116
      %s134 = sphi 0, %s134
      %s136 = sphi 0, %s134
      %s137 = sphi 0, %s136
      %s151 = sphi 0, %s137
      %s155 = sphi 0, %s155
      %s157 = sphi 0, %s155
      %s158 = sphi 0, %s157
      %s172 = sphi 0, %s158
      %s178 = sphi 0, %s180
      %s181 = sphi 0, %s178
      %s182 = sphi 0, %s181
      %s198 = sphi 0, %s182
    $region4: #{tpu_custom_call.1} parent=1 // loop_header_branch
      %19 = sbr.rel (%p17) target = $region8
    $region5: #{tpu_custom_call.1} parent=1 // loop_body
      %s21 = ssub.s32 %s16, 1
      %s22 = ssub.s32 %s16, 2
      %s23 = sadd.s32 %s16, 1
      %s24 = ssub.s32 %s16, %s23
      %p25 = scmp.eq.s32.totalorder %s24, 0
      %s27 = sadd.s32 %s26, 1
      %s28 = scalar_select %p25, %s26, %s27
      %p31 = pneg %p25
      %p32 = scmp.eq.s32.totalorder %s16, 1
      %p33 = por %p31, %p32
      %p34 = scmp.ne.s32.totalorder %s26, %s29
      %p35 = scmp.eq.s32.totalorder %s16, 0
      %p36 = por %p34, %p35
      %p37 = scmp.ne.s32.totalorder %s26, %s29
      %p38 = scmp.eq.s32.totalorder %s21, 1
      %p39 = por %p37, %p38
      %p40 = scmp.ne.s32.totalorder %s29, %s30
      %p41 = scmp.eq.s32.totalorder %s21, 0
      %p42 = por %p40, %p41
      %p43 = scmp.ne.s32.totalorder %s29, %s30
      %p44 = scmp.eq.s32.totalorder %s22, 1
      %p45 = por %p43, %p44
      %p47 = scmp.ne.s32.totalorder %s30, %s46
      %p48 = scmp.eq.s32.totalorder %s22, 0
      %p49 = por %p47, %p48
      %s51 = sadd.s32 %s50, 1
      %p54 = scmp.eq.s32.totalorder %s16, 1
      %p55 = scmp.ne.s32.totalorder %s50, %s52
      %p56 = scmp.eq.s32.totalorder %s16, 0
      %p57 = por %p55, %p56
      %p58 = scmp.ne.s32.totalorder %s50, %s52
      %p59 = scmp.eq.s32.totalorder %s21, 1
      %p60 = por %p58, %p59
      %p61 = scmp.ne.s32.totalorder %s52, %s53
      %p62 = scmp.eq.s32.totalorder %s21, 0
      %p63 = por %p61, %p62
      %p64 = scmp.ne.s32.totalorder %s52, %s53
      %p65 = scmp.eq.s32.totalorder %s22, 1
      %p66 = por %p64, %p65
      %p68 = scmp.ne.s32.totalorder %s53, %s67
      %p69 = scmp.eq.s32.totalorder %s22, 0
      %p70 = por %p68, %p69
      %s72 = sadd.s32 %s71, 1
      %p75 = scmp.eq.s32.totalorder %s16, 1
      %p76 = scmp.ne.s32.totalorder %s71, %s73
      %p77 = scmp.eq.s32.totalorder %s16, 0
      %p78 = por %p76, %p77
      %p79 = scmp.ne.s32.totalorder %s71, %s73
      %p80 = scmp.eq.s32.totalorder %s21, 1
      %p81 = por %p79, %p80
      %p82 = scmp.ne.s32.totalorder %s73, %s74
      %p83 = scmp.eq.s32.totalorder %s21, 0
      %p84 = por %p82, %p83
      %p85 = scmp.ne.s32.totalorder %s73, %s74
      %p86 = scmp.eq.s32.totalorder %s22, 1
      %p87 = por %p85, %p86
      %p89 = scmp.ne.s32.totalorder %s74, %s88
      %p90 = scmp.eq.s32.totalorder %s22, 0
      %p91 = por %p89, %p90
      %s93 = sadd.s32 %s92, 1
      %p96 = scmp.eq.s32.totalorder %s16, 1
      %p97 = scmp.ne.s32.totalorder %s92, %s94
      %p98 = scmp.eq.s32.totalorder %s16, 0
      %p99 = por %p97, %p98
      %p100 = scmp.ne.s32.totalorder %s92, %s94
      %p101 = scmp.eq.s32.totalorder %s21, 1
      %p102 = por %p100, %p101
      %p103 = scmp.ne.s32.totalorder %s94, %s95
      %p104 = scmp.eq.s32.totalorder %s21, 0
      %p105 = por %p103, %p104
      %p106 = scmp.ne.s32.totalorder %s94, %s95
      %p107 = scmp.eq.s32.totalorder %s22, 1
      %p108 = por %p106, %p107
      %p110 = scmp.ne.s32.totalorder %s95, %s109
      %p111 = scmp.eq.s32.totalorder %s22, 0
      %p112 = por %p110, %p111
      %s114 = sadd.s32 %s113, 1
      %p117 = scmp.eq.s32.totalorder %s16, 1
      %p118 = scmp.ne.s32.totalorder %s113, %s115
      %p119 = scmp.eq.s32.totalorder %s16, 0
      %p120 = por %p118, %p119
      %p121 = scmp.ne.s32.totalorder %s113, %s115
      %p122 = scmp.eq.s32.totalorder %s21, 1
      %p123 = por %p121, %p122
      %p124 = scmp.ne.s32.totalorder %s115, %s116
      %p125 = scmp.eq.s32.totalorder %s21, 0
      %p126 = por %p124, %p125
      %p127 = scmp.ne.s32.totalorder %s115, %s116
      %p128 = scmp.eq.s32.totalorder %s22, 1
      %p129 = por %p127, %p128
      %p131 = scmp.ne.s32.totalorder %s116, %s130
      %p132 = scmp.eq.s32.totalorder %s22, 0
      %p133 = por %p131, %p132
      %s135 = sadd.s32 %s134, 1
      %p138 = scmp.eq.s32.totalorder %s16, 1
      %p139 = scmp.ne.s32.totalorder %s134, %s136
      %p140 = scmp.eq.s32.totalorder %s16, 0
      %p141 = por %p139, %p140
      %p142 = scmp.ne.s32.totalorder %s134, %s136
      %p143 = scmp.eq.s32.totalorder %s21, 1
      %p144 = por %p142, %p143
      %p145 = scmp.ne.s32.totalorder %s136, %s137
      %p146 = scmp.eq.s32.totalorder %s21, 0
      %p147 = por %p145, %p146
      %p148 = scmp.ne.s32.totalorder %s136, %s137
      %p149 = scmp.eq.s32.totalorder %s22, 1
      %p150 = por %p148, %p149
      %p152 = scmp.ne.s32.totalorder %s137, %s151
      %p153 = scmp.eq.s32.totalorder %s22, 0
      %p154 = por %p152, %p153
      %s156 = sadd.s32 %s155, 1
      %p159 = scmp.eq.s32.totalorder %s16, 1
      %p160 = scmp.ne.s32.totalorder %s155, %s157
      %p161 = scmp.eq.s32.totalorder %s16, 0
      %p162 = por %p160, %p161
      %p163 = scmp.ne.s32.totalorder %s155, %s157
      %p164 = scmp.eq.s32.totalorder %s21, 1
      %p165 = por %p163, %p164
      %p166 = scmp.ne.s32.totalorder %s157, %s158
      %p167 = scmp.eq.s32.totalorder %s21, 0
      %p168 = por %p166, %p167
      %p169 = scmp.ne.s32.totalorder %s157, %s158
      %p170 = scmp.eq.s32.totalorder %s22, 1
      %p171 = por %p169, %p170
      %p173 = scmp.ne.s32.totalorder %s158, %s172
      %p174 = scmp.eq.s32.totalorder %s22, 0
      %p175 = por %p173, %p174
      %s176 = ssub.s32 %s16, %s23
      %p177 = scmp.eq.s32.totalorder %s176, 0
      %s179 = sadd.s32 %s178, 1
      %s180 = scalar_select %p177, %s178, %s179
      %p183 = pneg %p177
      %p184 = scmp.eq.s32.totalorder %s16, 1
      %p185 = por %p183, %p184
      %p186 = scmp.ne.s32.totalorder %s178, %s181
      %p187 = scmp.eq.s32.totalorder %s16, 0
      %p188 = por %p186, %p187
      %p189 = scmp.ne.s32.totalorder %s178, %s181
      %p190 = scmp.eq.s32.totalorder %s21, 1
      %p191 = por %p189, %p190
      %p192 = scmp.ne.s32.totalorder %s181, %s182
      %p193 = scmp.eq.s32.totalorder %s21, 0
      %p194 = por %p192, %p193
      %p195 = scmp.ne.s32.totalorder %s181, %s182
      %p196 = scmp.eq.s32.totalorder %s22, 1
      %p197 = por %p195, %p196
      %p199 = scmp.ne.s32.totalorder %s182, %s198
      %p200 = scmp.eq.s32.totalorder %s22, 0
      %p201 = por %p199, %p200
      %p202 = scmp.le.s32.totalorder 1, %s16
      %p203 = scmp.lt.s32.totalorder %s16, 3
      %p204 = pnand %p202, %p203
      %p205 = pneg %p204
      // Predicated region
      $region9: #{tpu_custom_call.1} parent=5 // pred_check
        _
      $region10: #{tpu_custom_call.1} parent=5 // pred_check_branch
        %207 = sbr.rel (%p204) target = $region12
      $region11: #{tpu_custom_call.1} parent=5 // pred_region
        %s208 = ssub.s32 %s16, 1
        // Predicated region
        $region13: #{tpu_custom_call.1} parent=11 // pred_check
          %p209 = pneg %p63
        $region14: #{tpu_custom_call.1} parent=11 // pred_check_branch
          %211 = sbr.rel (%p209) target = $region16
        $region15: #{tpu_custom_call.1} parent=11 // pred_region
          _
        $region16: #{tpu_custom_call.1} parent=11 // pred_fallthru
          _
        // Predicated region
        $region17: #{tpu_custom_call.1} parent=11 // pred_check
          %p212 = pneg %p84
        $region18: #{tpu_custom_call.1} parent=11 // pred_check_branch
          %214 = sbr.rel (%p212) target = $region20
        $region19: #{tpu_custom_call.1} parent=11 // pred_region
          _
        $region20: #{tpu_custom_call.1} parent=11 // pred_fallthru
          _
        // Predicated region
        $region21: #{tpu_custom_call.1} parent=11 // pred_check
          %p215 = pneg %p105
        $region22: #{tpu_custom_call.1} parent=11 // pred_check_branch
          %217 = sbr.rel (%p215) target = $region24
        $region23: #{tpu_custom_call.1} parent=11 // pred_region
          _
        $region24: #{tpu_custom_call.1} parent=11 // pred_fallthru
          _
        // Predicated region
        $region25: #{tpu_custom_call.1} parent=11 // pred_check
          %p218 = pneg %p126
        $region26: #{tpu_custom_call.1} parent=11 // pred_check_branch
          %220 = sbr.rel (%p218) target = $region28
        $region27: #{tpu_custom_call.1} parent=11 // pred_region
          _
        $region28: #{tpu_custom_call.1} parent=11 // pred_fallthru
          _
        // Predicated region
        $region29: #{tpu_custom_call.1} parent=11 // pred_check
          %p221 = pneg %p147
        $region30: #{tpu_custom_call.1} parent=11 // pred_check_branch
          %223 = sbr.rel (%p221) target = $region32
        $region31: #{tpu_custom_call.1} parent=11 // pred_region
          _
        $region32: #{tpu_custom_call.1} parent=11 // pred_fallthru
          _
        // Predicated region
        $region33: #{tpu_custom_call.1} parent=11 // pred_check
          %p224 = pneg %p168
        $region34: #{tpu_custom_call.1} parent=11 // pred_check_branch
          %226 = sbr.rel (%p224) target = $region36
        $region35: #{tpu_custom_call.1} parent=11 // pred_region
          _
        $region36: #{tpu_custom_call.1} parent=11 // pred_fallthru
          _
      $region12: #{tpu_custom_call.1} parent=5 // pred_fallthru
        _
      %p227 = scmp.lt.s32.totalorder %s16, 2
      // Predicated region
      $region37: #{tpu_custom_call.1} parent=5 // pred_check
        %p228 = pneg %p227
      $region38: #{tpu_custom_call.1} parent=5 // pred_check_branch
        %230 = sbr.rel (%p228) target = $region40
      $region39: #{tpu_custom_call.1} parent=5 // pred_region
        // Predicated region
        $region41: #{tpu_custom_call.1} parent=39 // pred_check
          %p231 = pneg %p36
        $region42: #{tpu_custom_call.1} parent=39 // pred_check_branch
          %233 = sbr.rel (%p231) target = $region44
        $region43: #{tpu_custom_call.1} parent=39 // pred_region
          %s234 = smul.u32 256, %s16
          %p235 = scmp.lt.s32.totalorder %s234, 511
          %s236 = scalar_select %p235, %s234, 511
          %s237 = smul.addr %s236, 8
          %s238 = scalar_lea.vmem %s0, %s237
          %s239 = smul.u32 256, %s16
        $region44: #{tpu_custom_call.1} parent=39 // pred_fallthru
          _
      $region40: #{tpu_custom_call.1} parent=5 // pred_fallthru
        _
      %p240 = scmp.le.s32.totalorder 1, %s16
      %p241 = scmp.lt.s32.totalorder %s16, 3
      %p242 = pnand %p240, %p241
      %p243 = pneg %p242
      // Predicated region
      $region45: #{tpu_custom_call.1} parent=5 // pred_check
        _
      $region46: #{tpu_custom_call.1} parent=5 // pred_check_branch
        %245 = sbr.rel (%p242) target = $region48
      $region47: #{tpu_custom_call.1} parent=5 // pred_region
        %s246 = ssub.s32 %s16, 1
        %s247 = smul.u32 256, %s21
        %p248 = scmp.lt.s32.totalorder %s247, 511
        %s249 = scalar_select %p248, %s247, 511
        %s250 = smul.addr %s249, 8
        %s251 = scalar_lea.vmem %s0, %s250
        %p252 = pneg %p42
        %p253 = pneg %p39
        %p254 = pneg %p63
        %p255 = pneg %p60
        %p256 = pneg %p84
        %p257 = pneg %p81
        %p258 = pneg %p105
        %p259 = pneg %p102
        %p260 = pneg %p126
        %p261 = pneg %p123
        %p262 = pneg %p147
        %p263 = pneg %p144
        %p264 = pneg %p168
        %p265 = pneg %p165
        %p266 = pneg %p194
        %p267 = pneg %p191
        %s268 = sand.u32 %s181, 1
        %s269 = scalar_lea.sflag [#allocation3], %s268
        %s270 = sand.u32 %s181, 1
        %s271 = smul.addr %s270, 256
        %s272 = scalar_lea.vmem [#allocation2], %s271
        %s273 = smul.u32 256, %s21
        %p274 = scmp.lt.s32.totalorder %s273, 511
        %s275 = scalar_select %p274, %s273, 511
        %s276 = smul.addr %s275, 8
        %s277 = scalar_lea.vmem %s0, %s276
        %s278 = smul.u32 256, %s21
        %s279 = smul.u32 16, %s21
        %v281 = vld [vmem:[%s277] sm:$0xff]
        %v282 = vld [vmem:[%s277 + $0x8] sm:$0xff]
        %v283 = vld [vmem:[%s277 + $0x10] sm:$0xff]
        %v284 = vld [vmem:[%s277 + $0x18] sm:$0xff]
        %v285 = vld [vmem:[%s277 + $0x20] sm:$0xff]
        %v286 = vld [vmem:[%s277 + $0x28] sm:$0xff]
        %v287 = vld [vmem:[%s277 + $0x30] sm:$0xff]
        %v288 = vld [vmem:[%s277 + $0x38] sm:$0xff]
        %v289 = vld [vmem:[%s277 + $0x40] sm:$0xff]
        %v290 = vld [vmem:[%s277 + $0x48] sm:$0xff]
        %v291 = vld [vmem:[%s277 + $0x50] sm:$0xff]
        %v292 = vld [vmem:[%s277 + $0x58] sm:$0xff]
        %v293 = vld [vmem:[%s277 + $0x60] sm:$0xff]
        %v294 = vld [vmem:[%s277 + $0x68] sm:$0xff]
        %v295 = vld [vmem:[%s277 + $0x70] sm:$0xff]
        %v296 = vld [vmem:[%s277 + $0x78] sm:$0xff]
        %v297 = vld [vmem:[%s277 + $0x80] sm:$0xff]
        %v298 = vld [vmem:[%s277 + $0x88] sm:$0xff]
        %v299 = vld [vmem:[%s277 + $0x90] sm:$0xff]
        %v300 = vld [vmem:[%s277 + $0x98] sm:$0xff]
        %v301 = vld [vmem:[%s277 + $0xa0] sm:$0xff]
        %v302 = vld [vmem:[%s277 + $0xa8] sm:$0xff]
        %v303 = vld [vmem:[%s277 + $0xb0] sm:$0xff]
        %v304 = vld [vmem:[%s277 + $0xb8] sm:$0xff]
        %v305 = vld [vmem:[%s277 + $0xc0] sm:$0xff]
        %v306 = vld [vmem:[%s277 + $0xc8] sm:$0xff]
        %v307 = vld [vmem:[%s277 + $0xd0] sm:$0xff]
        %v308 = vld [vmem:[%s277 + $0xd8] sm:$0xff]
        %v309 = vld [vmem:[%s277 + $0xe0] sm:$0xff]
        %v310 = vld [vmem:[%s277 + $0xe8] sm:$0xff]
        %v311 = vld [vmem:[%s277 + $0xf0] sm:$0xff]
        %v312 = vld [vmem:[%s277 + $0xf8] sm:$0xff]
        %v313 = vld [vmem:[%s277 + $0x100] sm:$0xff]
        %v314 = vld [vmem:[%s277 + $0x108] sm:$0xff]
        %v315 = vld [vmem:[%s277 + $0x110] sm:$0xff]
        %v316 = vld [vmem:[%s277 + $0x118] sm:$0xff]
        %v317 = vld [vmem:[%s277 + $0x120] sm:$0xff]
        %v318 = vld [vmem:[%s277 + $0x128] sm:$0xff]
        %v319 = vld [vmem:[%s277 + $0x130] sm:$0xff]
        %v320 = vld [vmem:[%s277 + $0x138] sm:$0xff]
        %v321 = vld [vmem:[%s277 + $0x140] sm:$0xff]
        %v322 = vld [vmem:[%s277 + $0x148] sm:$0xff]
        %v323 = vld [vmem:[%s277 + $0x150] sm:$0xff]
        %v324 = vld [vmem:[%s277 + $0x158] sm:$0xff]
        %v325 = vld [vmem:[%s277 + $0x160] sm:$0xff]
        %v326 = vld [vmem:[%s277 + $0x168] sm:$0xff]
        %v327 = vld [vmem:[%s277 + $0x170] sm:$0xff]
        %v328 = vld [vmem:[%s277 + $0x178] sm:$0xff]
        %v329 = vld [vmem:[%s277 + $0x180] sm:$0xff]
        %v330 = vld [vmem:[%s277 + $0x188] sm:$0xff]
        %v331 = vld [vmem:[%s277 + $0x190] sm:$0xff]
        %v332 = vld [vmem:[%s277 + $0x198] sm:$0xff]
        %v333 = vld [vmem:[%s277 + $0x1a0] sm:$0xff]
        %v334 = vld [vmem:[%s277 + $0x1a8] sm:$0xff]
        %v335 = vld [vmem:[%s277 + $0x1b0] sm:$0xff]
        %v336 = vld [vmem:[%s277 + $0x1b8] sm:$0xff]
        %v337 = vld [vmem:[%s277 + $0x1c0] sm:$0xff]
        %v338 = vld [vmem:[%s277 + $0x1c8] sm:$0xff]
        %v339 = vld [vmem:[%s277 + $0x1d0] sm:$0xff]
        %v340 = vld [vmem:[%s277 + $0x1d8] sm:$0xff]
        %v341 = vld [vmem:[%s277 + $0x1e0] sm:$0xff]
        %v342 = vld [vmem:[%s277 + $0x1e8] sm:$0xff]
        %v343 = vld [vmem:[%s277 + $0x1f0] sm:$0xff]
        %v344 = vld [vmem:[%s277 + $0x1f8] sm:$0xff]
        %v345 = vld [vmem:[%s277 + $0x200] sm:$0xff]
        %v346 = vld [vmem:[%s277 + $0x208] sm:$0xff]
        %v347 = vld [vmem:[%s277 + $0x210] sm:$0xff]
        %v348 = vld [vmem:[%s277 + $0x218] sm:$0xff]
        %v349 = vld [vmem:[%s277 + $0x220] sm:$0xff]
        %v350 = vld [vmem:[%s277 + $0x228] sm:$0xff]
        %v351 = vld [vmem:[%s277 + $0x230] sm:$0xff]
        %v352 = vld [vmem:[%s277 + $0x238] sm:$0xff]
        %v353 = vld [vmem:[%s277 + $0x240] sm:$0xff]
        %v354 = vld [vmem:[%s277 + $0x248] sm:$0xff]
        %v355 = vld [vmem:[%s277 + $0x250] sm:$0xff]
        %v356 = vld [vmem:[%s277 + $0x258] sm:$0xff]
        %v357 = vld [vmem:[%s277 + $0x260] sm:$0xff]
        %v358 = vld [vmem:[%s277 + $0x268] sm:$0xff]
        %v359 = vld [vmem:[%s277 + $0x270] sm:$0xff]
        %v360 = vld [vmem:[%s277 + $0x278] sm:$0xff]
        %v361 = vld [vmem:[%s277 + $0x280] sm:$0xff]
        %v362 = vld [vmem:[%s277 + $0x288] sm:$0xff]
        %v363 = vld [vmem:[%s277 + $0x290] sm:$0xff]
        %v364 = vld [vmem:[%s277 + $0x298] sm:$0xff]
        %v365 = vld [vmem:[%s277 + $0x2a0] sm:$0xff]
        %v366 = vld [vmem:[%s277 + $0x2a8] sm:$0xff]
        %v367 = vld [vmem:[%s277 + $0x2b0] sm:$0xff]
        %v368 = vld [vmem:[%s277 + $0x2b8] sm:$0xff]
        %v369 = vld [vmem:[%s277 + $0x2c0] sm:$0xff]
        %v370 = vld [vmem:[%s277 + $0x2c8] sm:$0xff]
        %v371 = vld [vmem:[%s277 + $0x2d0] sm:$0xff]
        %v372 = vld [vmem:[%s277 + $0x2d8] sm:$0xff]
        %v373 = vld [vmem:[%s277 + $0x2e0] sm:$0xff]
        %v374 = vld [vmem:[%s277 + $0x2e8] sm:$0xff]
        %v375 = vld [vmem:[%s277 + $0x2f0] sm:$0xff]
        %v376 = vld [vmem:[%s277 + $0x2f8] sm:$0xff]
        %v377 = vld [vmem:[%s277 + $0x300] sm:$0xff]
        %v378 = vld [vmem:[%s277 + $0x308] sm:$0xff]
        %v379 = vld [vmem:[%s277 + $0x310] sm:$0xff]
        %v380 = vld [vmem:[%s277 + $0x318] sm:$0xff]
        %v381 = vld [vmem:[%s277 + $0x320] sm:$0xff]
        %v382 = vld [vmem:[%s277 + $0x328] sm:$0xff]
        %v383 = vld [vmem:[%s277 + $0x330] sm:$0xff]
        %v384 = vld [vmem:[%s277 + $0x338] sm:$0xff]
        %v385 = vld [vmem:[%s277 + $0x340] sm:$0xff]
        %v386 = vld [vmem:[%s277 + $0x348] sm:$0xff]
        %v387 = vld [vmem:[%s277 + $0x350] sm:$0xff]
        %v388 = vld [vmem:[%s277 + $0x358] sm:$0xff]
        %v389 = vld [vmem:[%s277 + $0x360] sm:$0xff]
        %v390 = vld [vmem:[%s277 + $0x368] sm:$0xff]
        %v391 = vld [vmem:[%s277 + $0x370] sm:$0xff]
        %v392 = vld [vmem:[%s277 + $0x378] sm:$0xff]
        %v393 = vld [vmem:[%s277 + $0x380] sm:$0xff]
        %v394 = vld [vmem:[%s277 + $0x388] sm:$0xff]
        %v395 = vld [vmem:[%s277 + $0x390] sm:$0xff]
        %v396 = vld [vmem:[%s277 + $0x398] sm:$0xff]
        %v397 = vld [vmem:[%s277 + $0x3a0] sm:$0xff]
        %v398 = vld [vmem:[%s277 + $0x3a8] sm:$0xff]
        %v399 = vld [vmem:[%s277 + $0x3b0] sm:$0xff]
        %v400 = vld [vmem:[%s277 + $0x3b8] sm:$0xff]
        %v401 = vld [vmem:[%s277 + $0x3c0] sm:$0xff]
        %v402 = vld [vmem:[%s277 + $0x3c8] sm:$0xff]
        %v403 = vld [vmem:[%s277 + $0x3d0] sm:$0xff]
        %v404 = vld [vmem:[%s277 + $0x3d8] sm:$0xff]
        %v405 = vld [vmem:[%s277 + $0x3e0] sm:$0xff]
        %v406 = vld [vmem:[%s277 + $0x3e8] sm:$0xff]
        %v407 = vld [vmem:[%s277 + $0x3f0] sm:$0xff]
        %v408 = vld [vmem:[%s277 + $0x3f8] sm:$0xff]
        %v409 = vld [vmem:[%s277 + $0x400] sm:$0xff]
        %v410 = vld [vmem:[%s277 + $0x408] sm:$0xff]
        %v411 = vld [vmem:[%s277 + $0x410] sm:$0xff]
        %v412 = vld [vmem:[%s277 + $0x418] sm:$0xff]
        %v413 = vld [vmem:[%s277 + $0x420] sm:$0xff]
        %v414 = vld [vmem:[%s277 + $0x428] sm:$0xff]
        %v415 = vld [vmem:[%s277 + $0x430] sm:$0xff]
        %v416 = vld [vmem:[%s277 + $0x438] sm:$0xff]
        %v417 = vld [vmem:[%s277 + $0x440] sm:$0xff]
        %v418 = vld [vmem:[%s277 + $0x448] sm:$0xff]
        %v419 = vld [vmem:[%s277 + $0x450] sm:$0xff]
        %v420 = vld [vmem:[%s277 + $0x458] sm:$0xff]
        %v421 = vld [vmem:[%s277 + $0x460] sm:$0xff]
        %v422 = vld [vmem:[%s277 + $0x468] sm:$0xff]
        %v423 = vld [vmem:[%s277 + $0x470] sm:$0xff]
        %v424 = vld [vmem:[%s277 + $0x478] sm:$0xff]
        %v425 = vld [vmem:[%s277 + $0x480] sm:$0xff]
        %v426 = vld [vmem:[%s277 + $0x488] sm:$0xff]
        %v427 = vld [vmem:[%s277 + $0x490] sm:$0xff]
        %v428 = vld [vmem:[%s277 + $0x498] sm:$0xff]
        %v429 = vld [vmem:[%s277 + $0x4a0] sm:$0xff]
        %v430 = vld [vmem:[%s277 + $0x4a8] sm:$0xff]
        %v431 = vld [vmem:[%s277 + $0x4b0] sm:$0xff]
        %v432 = vld [vmem:[%s277 + $0x4b8] sm:$0xff]
        %v433 = vld [vmem:[%s277 + $0x4c0] sm:$0xff]
        %v434 = vld [vmem:[%s277 + $0x4c8] sm:$0xff]
        %v435 = vld [vmem:[%s277 + $0x4d0] sm:$0xff]
        %v436 = vld [vmem:[%s277 + $0x4d8] sm:$0xff]
        %v437 = vld [vmem:[%s277 + $0x4e0] sm:$0xff]
        %v438 = vld [vmem:[%s277 + $0x4e8] sm:$0xff]
        %v439 = vld [vmem:[%s277 + $0x4f0] sm:$0xff]
        %v440 = vld [vmem:[%s277 + $0x4f8] sm:$0xff]
        %v441 = vld [vmem:[%s277 + $0x500] sm:$0xff]
        %v442 = vld [vmem:[%s277 + $0x508] sm:$0xff]
        %v443 = vld [vmem:[%s277 + $0x510] sm:$0xff]
        %v444 = vld [vmem:[%s277 + $0x518] sm:$0xff]
        %v445 = vld [vmem:[%s277 + $0x520] sm:$0xff]
        %v446 = vld [vmem:[%s277 + $0x528] sm:$0xff]
        %v447 = vld [vmem:[%s277 + $0x530] sm:$0xff]
        %v448 = vld [vmem:[%s277 + $0x538] sm:$0xff]
        %v449 = vld [vmem:[%s277 + $0x540] sm:$0xff]
        %v450 = vld [vmem:[%s277 + $0x548] sm:$0xff]
        %v451 = vld [vmem:[%s277 + $0x550] sm:$0xff]
        %v452 = vld [vmem:[%s277 + $0x558] sm:$0xff]
        %v453 = vld [vmem:[%s277 + $0x560] sm:$0xff]
        %v454 = vld [vmem:[%s277 + $0x568] sm:$0xff]
        %v455 = vld [vmem:[%s277 + $0x570] sm:$0xff]
        %v456 = vld [vmem:[%s277 + $0x578] sm:$0xff]
        %v457 = vld [vmem:[%s277 + $0x580] sm:$0xff]
        %v458 = vld [vmem:[%s277 + $0x588] sm:$0xff]
        %v459 = vld [vmem:[%s277 + $0x590] sm:$0xff]
        %v460 = vld [vmem:[%s277 + $0x598] sm:$0xff]
        %v461 = vld [vmem:[%s277 + $0x5a0] sm:$0xff]
        %v462 = vld [vmem:[%s277 + $0x5a8] sm:$0xff]
        %v463 = vld [vmem:[%s277 + $0x5b0] sm:$0xff]
        %v464 = vld [vmem:[%s277 + $0x5b8] sm:$0xff]
        %v465 = vld [vmem:[%s277 + $0x5c0] sm:$0xff]
        %v466 = vld [vmem:[%s277 + $0x5c8] sm:$0xff]
        %v467 = vld [vmem:[%s277 + $0x5d0] sm:$0xff]
        %v468 = vld [vmem:[%s277 + $0x5d8] sm:$0xff]
        %v469 = vld [vmem:[%s277 + $0x5e0] sm:$0xff]
        %v470 = vld [vmem:[%s277 + $0x5e8] sm:$0xff]
        %v471 = vld [vmem:[%s277 + $0x5f0] sm:$0xff]
        %v472 = vld [vmem:[%s277 + $0x5f8] sm:$0xff]
        %v473 = vld [vmem:[%s277 + $0x600] sm:$0xff]
        %v474 = vld [vmem:[%s277 + $0x608] sm:$0xff]
        %v475 = vld [vmem:[%s277 + $0x610] sm:$0xff]
        %v476 = vld [vmem:[%s277 + $0x618] sm:$0xff]
        %v477 = vld [vmem:[%s277 + $0x620] sm:$0xff]
        %v478 = vld [vmem:[%s277 + $0x628] sm:$0xff]
        %v479 = vld [vmem:[%s277 + $0x630] sm:$0xff]
        %v480 = vld [vmem:[%s277 + $0x638] sm:$0xff]
        %v481 = vld [vmem:[%s277 + $0x640] sm:$0xff]
        %v482 = vld [vmem:[%s277 + $0x648] sm:$0xff]
        %v483 = vld [vmem:[%s277 + $0x650] sm:$0xff]
        %v484 = vld [vmem:[%s277 + $0x658] sm:$0xff]
        %v485 = vld [vmem:[%s277 + $0x660] sm:$0xff]
        %v486 = vld [vmem:[%s277 + $0x668] sm:$0xff]
        %v487 = vld [vmem:[%s277 + $0x670] sm:$0xff]
        %v488 = vld [vmem:[%s277 + $0x678] sm:$0xff]
        %v489 = vld [vmem:[%s277 + $0x680] sm:$0xff]
        %v490 = vld [vmem:[%s277 + $0x688] sm:$0xff]
        %v491 = vld [vmem:[%s277 + $0x690] sm:$0xff]
        %v492 = vld [vmem:[%s277 + $0x698] sm:$0xff]
        %v493 = vld [vmem:[%s277 + $0x6a0] sm:$0xff]
        %v494 = vld [vmem:[%s277 + $0x6a8] sm:$0xff]
        %v495 = vld [vmem:[%s277 + $0x6b0] sm:$0xff]
        %v496 = vld [vmem:[%s277 + $0x6b8] sm:$0xff]
        %v497 = vld [vmem:[%s277 + $0x6c0] sm:$0xff]
        %v498 = vld [vmem:[%s277 + $0x6c8] sm:$0xff]
        %v499 = vld [vmem:[%s277 + $0x6d0] sm:$0xff]
        %v500 = vld [vmem:[%s277 + $0x6d8] sm:$0xff]
        %v501 = vld [vmem:[%s277 + $0x6e0] sm:$0xff]
        %v502 = vld [vmem:[%s277 + $0x6e8] sm:$0xff]
        %v503 = vld [vmem:[%s277 + $0x6f0] sm:$0xff]
        %v504 = vld [vmem:[%s277 + $0x6f8] sm:$0xff]
        %v505 = vld [vmem:[%s277 + $0x700] sm:$0xff]
        %v506 = vld [vmem:[%s277 + $0x708] sm:$0xff]
        %v507 = vld [vmem:[%s277 + $0x710] sm:$0xff]
        %v508 = vld [vmem:[%s277 + $0x718] sm:$0xff]
        %v509 = vld [vmem:[%s277 + $0x720] sm:$0xff]
        %v510 = vld [vmem:[%s277 + $0x728] sm:$0xff]
        %v511 = vld [vmem:[%s277 + $0x730] sm:$0xff]
        %v512 = vld [vmem:[%s277 + $0x738] sm:$0xff]
        %v513 = vld [vmem:[%s277 + $0x740] sm:$0xff]
        %v514 = vld [vmem:[%s277 + $0x748] sm:$0xff]
        %v515 = vld [vmem:[%s277 + $0x750] sm:$0xff]
        %v516 = vld [vmem:[%s277 + $0x758] sm:$0xff]
        %v517 = vld [vmem:[%s277 + $0x760] sm:$0xff]
        %v518 = vld [vmem:[%s277 + $0x768] sm:$0xff]
        %v519 = vld [vmem:[%s277 + $0x770] sm:$0xff]
        %v520 = vld [vmem:[%s277 + $0x778] sm:$0xff]
        %v521 = vld [vmem:[%s277 + $0x780] sm:$0xff]
        %v522 = vld [vmem:[%s277 + $0x788] sm:$0xff]
        %v523 = vld [vmem:[%s277 + $0x790] sm:$0xff]
        %v524 = vld [vmem:[%s277 + $0x798] sm:$0xff]
        %v525 = vld [vmem:[%s277 + $0x7a0] sm:$0xff]
        %v526 = vld [vmem:[%s277 + $0x7a8] sm:$0xff]
        %v527 = vld [vmem:[%s277 + $0x7b0] sm:$0xff]
        %v528 = vld [vmem:[%s277 + $0x7b8] sm:$0xff]
        %v529 = vld [vmem:[%s277 + $0x7c0] sm:$0xff]
        %v530 = vld [vmem:[%s277 + $0x7c8] sm:$0xff]
        %v531 = vld [vmem:[%s277 + $0x7d0] sm:$0xff]
        %v532 = vld [vmem:[%s277 + $0x7d8] sm:$0xff]
        %v533 = vld [vmem:[%s277 + $0x7e0] sm:$0xff]
        %v534 = vld [vmem:[%s277 + $0x7e8] sm:$0xff]
        %v535 = vld [vmem:[%s277 + $0x7f0] sm:$0xff]
        %v536 = vld [vmem:[%s277 + $0x7f8] sm:$0xff]
        %v537 = vpack.c.bf16 %v282, %v281
        %v538 = vpack.c.bf16 %v284, %v283
        %v539 = vpack.c.bf16 %v286, %v285
        %v540 = vpack.c.bf16 %v288, %v287
        %v541 = vpack.c.bf16 %v290, %v289
        %v542 = vpack.c.bf16 %v292, %v291
        %v543 = vpack.c.bf16 %v294, %v293
        %v544 = vpack.c.bf16 %v296, %v295
        %v545 = vpack.c.bf16 %v298, %v297
        %v546 = vpack.c.bf16 %v300, %v299
        %v547 = vpack.c.bf16 %v302, %v301
        %v548 = vpack.c.bf16 %v304, %v303
        %v549 = vpack.c.bf16 %v306, %v305
        %v550 = vpack.c.bf16 %v308, %v307
        %v551 = vpack.c.bf16 %v310, %v309
        %v552 = vpack.c.bf16 %v312, %v311
        %v553 = vpack.c.bf16 %v314, %v313
        %v554 = vpack.c.bf16 %v316, %v315
        %v555 = vpack.c.bf16 %v318, %v317
        %v556 = vpack.c.bf16 %v320, %v319
        %v557 = vpack.c.bf16 %v322, %v321
        %v558 = vpack.c.bf16 %v324, %v323
        %v559 = vpack.c.bf16 %v326, %v325
        %v560 = vpack.c.bf16 %v328, %v327
        %v561 = vpack.c.bf16 %v330, %v329
        %v562 = vpack.c.bf16 %v332, %v331
        %v563 = vpack.c.bf16 %v334, %v333
        %v564 = vpack.c.bf16 %v336, %v335
        %v565 = vpack.c.bf16 %v338, %v337
        %v566 = vpack.c.bf16 %v340, %v339
        %v567 = vpack.c.bf16 %v342, %v341
        %v568 = vpack.c.bf16 %v344, %v343
        %v569 = vpack.c.bf16 %v346, %v345
        %v570 = vpack.c.bf16 %v348, %v347
        %v571 = vpack.c.bf16 %v350, %v349
        %v572 = vpack.c.bf16 %v352, %v351
        %v573 = vpack.c.bf16 %v354, %v353
        %v574 = vpack.c.bf16 %v356, %v355
        %v575 = vpack.c.bf16 %v358, %v357
        %v576 = vpack.c.bf16 %v360, %v359
        %v577 = vpack.c.bf16 %v362, %v361
        %v578 = vpack.c.bf16 %v364, %v363
        %v579 = vpack.c.bf16 %v366, %v365
        %v580 = vpack.c.bf16 %v368, %v367
        %v581 = vpack.c.bf16 %v370, %v369
        %v582 = vpack.c.bf16 %v372, %v371
        %v583 = vpack.c.bf16 %v374, %v373
        %v584 = vpack.c.bf16 %v376, %v375
        %v585 = vpack.c.bf16 %v378, %v377
        %v586 = vpack.c.bf16 %v380, %v379
        %v587 = vpack.c.bf16 %v382, %v381
        %v588 = vpack.c.bf16 %v384, %v383
        %v589 = vpack.c.bf16 %v386, %v385
        %v590 = vpack.c.bf16 %v388, %v387
        %v591 = vpack.c.bf16 %v390, %v389
        %v592 = vpack.c.bf16 %v392, %v391
        %v593 = vpack.c.bf16 %v394, %v393
        %v594 = vpack.c.bf16 %v396, %v395
        %v595 = vpack.c.bf16 %v398, %v397
        %v596 = vpack.c.bf16 %v400, %v399
        %v597 = vpack.c.bf16 %v402, %v401
        %v598 = vpack.c.bf16 %v404, %v403
        %v599 = vpack.c.bf16 %v406, %v405
        %v600 = vpack.c.bf16 %v408, %v407
        %v601 = vpack.c.bf16 %v410, %v409
        %v602 = vpack.c.bf16 %v412, %v411
        %v603 = vpack.c.bf16 %v414, %v413
        %v604 = vpack.c.bf16 %v416, %v415
        %v605 = vpack.c.bf16 %v418, %v417
        %v606 = vpack.c.bf16 %v420, %v419
        %v607 = vpack.c.bf16 %v422, %v421
        %v608 = vpack.c.bf16 %v424, %v423
        %v609 = vpack.c.bf16 %v426, %v425
        %v610 = vpack.c.bf16 %v428, %v427
        %v611 = vpack.c.bf16 %v430, %v429
        %v612 = vpack.c.bf16 %v432, %v431
        %v613 = vpack.c.bf16 %v434, %v433
        %v614 = vpack.c.bf16 %v436, %v435
        %v615 = vpack.c.bf16 %v438, %v437
        %v616 = vpack.c.bf16 %v440, %v439
        %v617 = vpack.c.bf16 %v442, %v441
        %v618 = vpack.c.bf16 %v444, %v443
        %v619 = vpack.c.bf16 %v446, %v445
        %v620 = vpack.c.bf16 %v448, %v447
        %v621 = vpack.c.bf16 %v450, %v449
        %v622 = vpack.c.bf16 %v452, %v451
        %v623 = vpack.c.bf16 %v454, %v453
        %v624 = vpack.c.bf16 %v456, %v455
        %v625 = vpack.c.bf16 %v458, %v457
        %v626 = vpack.c.bf16 %v460, %v459
        %v627 = vpack.c.bf16 %v462, %v461
        %v628 = vpack.c.bf16 %v464, %v463
        %v629 = vpack.c.bf16 %v466, %v465
        %v630 = vpack.c.bf16 %v468, %v467
        %v631 = vpack.c.bf16 %v470, %v469
        %v632 = vpack.c.bf16 %v472, %v471
        %v633 = vpack.c.bf16 %v474, %v473
        %v634 = vpack.c.bf16 %v476, %v475
        %v635 = vpack.c.bf16 %v478, %v477
        %v636 = vpack.c.bf16 %v480, %v479
        %v637 = vpack.c.bf16 %v482, %v481
        %v638 = vpack.c.bf16 %v484, %v483
        %v639 = vpack.c.bf16 %v486, %v485
        %v640 = vpack.c.bf16 %v488, %v487
        %v641 = vpack.c.bf16 %v490, %v489
        %v642 = vpack.c.bf16 %v492, %v491
        %v643 = vpack.c.bf16 %v494, %v493
        %v644 = vpack.c.bf16 %v496, %v495
        %v645 = vpack.c.bf16 %v498, %v497
        %v646 = vpack.c.bf16 %v500, %v499
        %v647 = vpack.c.bf16 %v502, %v501
        %v648 = vpack.c.bf16 %v504, %v503
        %v649 = vpack.c.bf16 %v506, %v505
        %v650 = vpack.c.bf16 %v508, %v507
        %v651 = vpack.c.bf16 %v510, %v509
        %v652 = vpack.c.bf16 %v512, %v511
        %v653 = vpack.c.bf16 %v514, %v513
        %v654 = vpack.c.bf16 %v516, %v515
        %v655 = vpack.c.bf16 %v518, %v517
        %v656 = vpack.c.bf16 %v520, %v519
        %v657 = vpack.c.bf16 %v522, %v521
        %v658 = vpack.c.bf16 %v524, %v523
        %v659 = vpack.c.bf16 %v526, %v525
        %v660 = vpack.c.bf16 %v528, %v527
        %v661 = vpack.c.bf16 %v530, %v529
        %v662 = vpack.c.bf16 %v532, %v531
        %v663 = vpack.c.bf16 %v534, %v533
        %v664 = vpack.c.bf16 %v536, %v535
        %v665 = vld [vmem:[%s1] sm:$0xf]
        %v666 = vld [vmem:[%s1 + $0x4] sm:$0xf]
        %v667 = vld [vmem:[%s1 + $0x8] sm:$0xf]
        %v668 = vld [vmem:[%s1 + $0xc] sm:$0xf]
        %v669 = vld [vmem:[%s1 + $0x10] sm:$0xf]
        %v670 = vld [vmem:[%s1 + $0x14] sm:$0xf]
        %v671 = vld [vmem:[%s1 + $0x18] sm:$0xf]
        %v672 = vld [vmem:[%s1 + $0x1c] sm:$0xf]
        %v673 = vld [vmem:[%s2] sm:$0xff]
        %v674 = vld [vmem:[%s2 + $0x8] sm:$0xff]
        %v675 = vld [vmem:[%s2 + $0x10] sm:$0xff]
        %v676 = vld [vmem:[%s2 + $0x18] sm:$0xff]
        %v677 = vld [vmem:[%s2 + $0x20] sm:$0xff]
        %v678 = vld [vmem:[%s2 + $0x28] sm:$0xff]
        %v679 = vld [vmem:[%s2 + $0x30] sm:$0xff]
        %v680 = vld [vmem:[%s2 + $0x38] sm:$0xff]
        %682 = vset.pattern.permute.xlu0 0
        %683 = vperm.xlu0 %682, %v673
        %v684 = vpop.permute.xlu0 %683
        %687 = vset.pattern.permute.xlu0 0
        %688 = vperm.xlu0 %687, %v674
        %v689 = vpop.permute.xlu0 %688
        %692 = vset.pattern.permute.xlu0 0
        %693 = vperm.xlu0 %692, %v675
        %v694 = vpop.permute.xlu0 %693
        %697 = vset.pattern.permute.xlu0 0
        %698 = vperm.xlu0 %697, %v676
        %v699 = vpop.permute.xlu0 %698
        %702 = vset.pattern.permute.xlu0 0
        %703 = vperm.xlu0 %702, %v677
        %v704 = vpop.permute.xlu0 %703
        %707 = vset.pattern.permute.xlu0 0
        %708 = vperm.xlu0 %707, %v678
        %v709 = vpop.permute.xlu0 %708
        %712 = vset.pattern.permute.xlu0 0
        %713 = vperm.xlu0 %712, %v679
        %v714 = vpop.permute.xlu0 %713
        %717 = vset.pattern.permute.xlu0 0
        %718 = vperm.xlu0 %717, %v680
        %v719 = vpop.permute.xlu0 %718
        %v729 = vunpack.c.l.b16 %v665
        %v730 = vunpack.c.l.b16 %v666
        %v731 = vunpack.c.l.b16 %v667
        %v732 = vunpack.c.l.b16 %v668
        %v733 = vunpack.c.l.b16 %v669
        %v734 = vunpack.c.l.b16 %v670
        %v735 = vunpack.c.l.b16 %v671
        %v736 = vunpack.c.l.b16 %v672
        %v737 = vpack.c.b16 %v730, %v729
        %v738 = vpack.c.b16 %v732, %v731
        %v739 = vpack.c.b16 %v734, %v733
        %v740 = vpack.c.b16 %v736, %v735
        %vm741 = vcmask 261120
        %v743 = vsel %vm741, %v737, 0
        %v746 = vsel %vm741, %v738, 0
        %v749 = vsel %vm741, %v739, 0
        %v752 = vsel %vm741, %v740, 0
        %v755 = vsel %vm741, %v537, 0
        %v758 = vsel %vm741, %v538, 0
        %v761 = vsel %vm741, %v539, 0
        %v764 = vsel %vm741, %v540, 0
        %v767 = vsel %vm741, %v541, 0
        %v770 = vsel %vm741, %v542, 0
        %v773 = vsel %vm741, %v543, 0
        %v776 = vsel %vm741, %v544, 0
        %v779 = vsel %vm741, %v545, 0
        %v782 = vsel %vm741, %v546, 0
        %v785 = vsel %vm741, %v547, 0
        %v788 = vsel %vm741, %v548, 0
        %v791 = vsel %vm741, %v549, 0
        %v794 = vsel %vm741, %v550, 0
        %v797 = vsel %vm741, %v551, 0
        %v800 = vsel %vm741, %v552, 0
        %v803 = vsel %vm741, %v553, 0
        %v806 = vsel %vm741, %v554, 0
        %v809 = vsel %vm741, %v555, 0
        %v812 = vsel %vm741, %v556, 0
        %v815 = vsel %vm741, %v557, 0
        %v818 = vsel %vm741, %v558, 0
        %v821 = vsel %vm741, %v559, 0
        %v824 = vsel %vm741, %v560, 0
        %v827 = vsel %vm741, %v561, 0
        %v830 = vsel %vm741, %v562, 0
        %v833 = vsel %vm741, %v563, 0
        %v836 = vsel %vm741, %v564, 0
        %v839 = vsel %vm741, %v565, 0
        %v842 = vsel %vm741, %v566, 0
        %v845 = vsel %vm741, %v567, 0
        %v848 = vsel %vm741, %v568, 0
        %v851 = vsel %vm741, %v569, 0
        %v854 = vsel %vm741, %v570, 0
        %v857 = vsel %vm741, %v571, 0
        %v860 = vsel %vm741, %v572, 0
        %v863 = vsel %vm741, %v573, 0
        %v866 = vsel %vm741, %v574, 0
        %v869 = vsel %vm741, %v575, 0
        %v872 = vsel %vm741, %v576, 0
        %v875 = vsel %vm741, %v577, 0
        %v878 = vsel %vm741, %v578, 0
        %v881 = vsel %vm741, %v579, 0
        %v884 = vsel %vm741, %v580, 0
        %v887 = vsel %vm741, %v581, 0
        %v890 = vsel %vm741, %v582, 0
        %v893 = vsel %vm741, %v583, 0
        %v896 = vsel %vm741, %v584, 0
        %v899 = vsel %vm741, %v585, 0
        %v902 = vsel %vm741, %v586, 0
        %v905 = vsel %vm741, %v587, 0
        %v908 = vsel %vm741, %v588, 0
        %v911 = vsel %vm741, %v589, 0
        %v914 = vsel %vm741, %v590, 0
        %v917 = vsel %vm741, %v591, 0
        %v920 = vsel %vm741, %v592, 0
        %v923 = vsel %vm741, %v593, 0
        %v926 = vsel %vm741, %v594, 0
        %v929 = vsel %vm741, %v595, 0
        %v932 = vsel %vm741, %v596, 0
        %v935 = vsel %vm741, %v597, 0
        %v938 = vsel %vm741, %v598, 0
        %v941 = vsel %vm741, %v599, 0
        %v944 = vsel %vm741, %v600, 0
        %v947 = vsel %vm741, %v601, 0
        %v950 = vsel %vm741, %v602, 0
        %v953 = vsel %vm741, %v603, 0
        %v956 = vsel %vm741, %v604, 0
        %v959 = vsel %vm741, %v605, 0
        %v962 = vsel %vm741, %v606, 0
        %v965 = vsel %vm741, %v607, 0
        %v968 = vsel %vm741, %v608, 0
        %v971 = vsel %vm741, %v609, 0
        %v974 = vsel %vm741, %v610, 0
        %v977 = vsel %vm741, %v611, 0
        %v980 = vsel %vm741, %v612, 0
        %v983 = vsel %vm741, %v613, 0
        %v986 = vsel %vm741, %v614, 0
        %v989 = vsel %vm741, %v615, 0
        %v992 = vsel %vm741, %v616, 0
        %v995 = vsel %vm741, %v617, 0
        %v998 = vsel %vm741, %v618, 0
        %v1001 = vsel %vm741, %v619, 0
        %v1004 = vsel %vm741, %v620, 0
        %v1007 = vsel %vm741, %v621, 0
        %v1010 = vsel %vm741, %v622, 0
        %v1013 = vsel %vm741, %v623, 0
        %v1016 = vsel %vm741, %v624, 0
        %v1019 = vsel %vm741, %v625, 0
        %v1022 = vsel %vm741, %v626, 0
        %v1025 = vsel %vm741, %v627, 0
        %v1028 = vsel %vm741, %v628, 0
        %v1031 = vsel %vm741, %v629, 0
        %v1034 = vsel %vm741, %v630, 0
        %v1037 = vsel %vm741, %v631, 0
        %v1040 = vsel %vm741, %v632, 0
        %v1043 = vsel %vm741, %v633, 0
        %v1046 = vsel %vm741, %v634, 0
        %v1049 = vsel %vm741, %v635, 0
        %v1052 = vsel %vm741, %v636, 0
        %v1055 = vsel %vm741, %v637, 0
        %v1058 = vsel %vm741, %v638, 0
        %v1061 = vsel %vm741, %v639, 0
        %v1064 = vsel %vm741, %v640, 0
        %v1067 = vsel %vm741, %v641, 0
        %v1070 = vsel %vm741, %v642, 0
        %v1073 = vsel %vm741, %v643, 0
        %v1076 = vsel %vm741, %v644, 0
        %v1079 = vsel %vm741, %v645, 0
        %v1082 = vsel %vm741, %v646, 0
        %v1085 = vsel %vm741, %v647, 0
        %v1088 = vsel %vm741, %v648, 0
        %v1091 = vsel %vm741, %v649, 0
        %v1094 = vsel %vm741, %v650, 0
        %v1097 = vsel %vm741, %v651, 0
        %v1100 = vsel %vm741, %v652, 0
        %v1103 = vsel %vm741, %v653, 0
        %v1106 = vsel %vm741, %v654, 0
        %v1109 = vsel %vm741, %v655, 0
        %v1112 = vsel %vm741, %v656, 0
        %v1115 = vsel %vm741, %v657, 0
        %v1118 = vsel %vm741, %v658, 0
        %v1121 = vsel %vm741, %v659, 0
        %v1124 = vsel %vm741, %v660, 0
        %v1127 = vsel %vm741, %v661, 0
        %v1130 = vsel %vm741, %v662, 0
        %v1133 = vsel %vm741, %v663, 0
        %v1136 = vsel %vm741, %v664, 0
        %1138 = vmatpush.bf16.xpose.msra.mxu0 %v776
        %1139 = vmatpush.bf16.xpose.msra.mxu0 %v773
        %1140 = vmatpush.bf16.xpose.msra.mxu0 %v770
        %1141 = vmatpush.bf16.xpose.msra.mxu0 %v767
        %1142 = vmatpush.bf16.xpose.msra.mxu0 %v764
        %1143 = vmatpush.bf16.xpose.msra.mxu0 %v761
        %1144 = vmatpush.bf16.xpose.msra.mxu0 %v758
        %1145 = vmatpush.bf16.xpose.msra.mxu0 %v755
        %1146 = vmatmul.bf16.gmra.mxu0 %v743
        %v1147 = vpop.f32.mrf.mxu0
        %v1148 = vadd.f32 %v684, %v1147
        %v1149 = vpop.f32.mrf.mxu0
        %v1150 = vadd.f32 %v689, %v1149
        %1151 = vmatmul.bf16.gmra.mxu0 %v746
        %v1152 = vpop.f32.mrf.mxu0
        %v1153 = vadd.f32 %v694, %v1152
        %v1154 = vpop.f32.mrf.mxu0
        %v1155 = vadd.f32 %v699, %v1154
        %1156 = vmatmul.bf16.gmra.mxu0 %v749
        %v1157 = vpop.f32.mrf.mxu0
        %v1158 = vadd.f32 %v704, %v1157
        %v1159 = vpop.f32.mrf.mxu0
        %v1160 = vadd.f32 %v709, %v1159
        %1161 = vmatmul.bf16.gmra.mxu0 %v752
        %v1162 = vpop.f32.mrf.mxu0
        %v1163 = vadd.f32 %v714, %v1162
        %v1164 = vpop.f32.mrf.mxu0
        %v1165 = vadd.f32 %v719, %v1164
        %1166 = vdwg.mxu0
        %1167 = vmatpush.bf16.xpose.msra.mxu0 %v800
        %1168 = vmatpush.bf16.xpose.msra.mxu0 %v797
        %1169 = vmatpush.bf16.xpose.msra.mxu0 %v794
        %1170 = vmatpush.bf16.xpose.msra.mxu0 %v791
        %1171 = vmatpush.bf16.xpose.msra.mxu0 %v788
        %1172 = vmatpush.bf16.xpose.msra.mxu0 %v785
        %1173 = vmatpush.bf16.xpose.msra.mxu0 %v782
        %1174 = vmatpush.bf16.xpose.msra.mxu0 %v779
        %1175 = vmatmul.bf16.gmra.mxu0 %v743
        %v1176 = vpop.f32.mrf.mxu0
        %v1177 = vadd.f32 %v684, %v1176
        %v1178 = vpop.f32.mrf.mxu0
        %v1179 = vadd.f32 %v689, %v1178
        %1180 = vmatmul.bf16.gmra.mxu0 %v746
        %v1181 = vpop.f32.mrf.mxu0
        %v1182 = vadd.f32 %v694, %v1181
        %v1183 = vpop.f32.mrf.mxu0
        %v1184 = vadd.f32 %v699, %v1183
        %1185 = vmatmul.bf16.gmra.mxu0 %v749
        %v1186 = vpop.f32.mrf.mxu0
        %v1187 = vadd.f32 %v704, %v1186
        %v1188 = vpop.f32.mrf.mxu0
        %v1189 = vadd.f32 %v709, %v1188
        %1190 = vmatmul.bf16.gmra.mxu0 %v752
        %v1191 = vpop.f32.mrf.mxu0
        %v1192 = vadd.f32 %v714, %v1191
        %v1193 = vpop.f32.mrf.mxu0
        %v1194 = vadd.f32 %v719, %v1193
        %1195 = vdwg.mxu0
        %1196 = vmatpush.bf16.xpose.msra.mxu0 %v824
        %1197 = vmatpush.bf16.xpose.msra.mxu0 %v821
        %1198 = vmatpush.bf16.xpose.msra.mxu0 %v818
        %1199 = vmatpush.bf16.xpose.msra.mxu0 %v815
        %1200 = vmatpush.bf16.xpose.msra.mxu0 %v812
        %1201 = vmatpush.bf16.xpose.msra.mxu0 %v809
        %1202 = vmatpush.bf16.xpose.msra.mxu0 %v806
        %1203 = vmatpush.bf16.xpose.msra.mxu0 %v803
        %1204 = vmatmul.bf16.gmra.mxu0 %v743
        %v1205 = vpop.f32.mrf.mxu0
        %v1206 = vadd.f32 %v684, %v1205
        %v1207 = vpop.f32.mrf.mxu0
        %v1208 = vadd.f32 %v689, %v1207
        %1209 = vmatmul.bf16.gmra.mxu0 %v746
        %v1210 = vpop.f32.mrf.mxu0
        %v1211 = vadd.f32 %v694, %v1210
        %v1212 = vpop.f32.mrf.mxu0
        %v1213 = vadd.f32 %v699, %v1212
        %1214 = vmatmul.bf16.gmra.mxu0 %v749
        %v1215 = vpop.f32.mrf.mxu0
        %v1216 = vadd.f32 %v704, %v1215
        %v1217 = vpop.f32.mrf.mxu0
        %v1218 = vadd.f32 %v709, %v1217
        %1219 = vmatmul.bf16.gmra.mxu0 %v752
        %v1220 = vpop.f32.mrf.mxu0
        %v1221 = vadd.f32 %v714, %v1220
        %v1222 = vpop.f32.mrf.mxu0
        %v1223 = vadd.f32 %v719, %v1222
        %1224 = vdwg.mxu0
        %1225 = vmatpush.bf16.xpose.msra.mxu0 %v848
        %1226 = vmatpush.bf16.xpose.msra.mxu0 %v845
        %1227 = vmatpush.bf16.xpose.msra.mxu0 %v842
        %1228 = vmatpush.bf16.xpose.msra.mxu0 %v839
        %1229 = vmatpush.bf16.xpose.msra.mxu0 %v836
        %1230 = vmatpush.bf16.xpose.msra.mxu0 %v833
        %1231 = vmatpush.bf16.xpose.msra.mxu0 %v830
        %1232 = vmatpush.bf16.xpose.msra.mxu0 %v827
        %1233 = vmatmul.bf16.gmra.mxu0 %v743
        %v1234 = vpop.f32.mrf.mxu0
        %v1235 = vadd.f32 %v684, %v1234
        %v1236 = vpop.f32.mrf.mxu0
        %v1237 = vadd.f32 %v689, %v1236
        %1238 = vmatmul.bf16.gmra.mxu0 %v746
        %v1239 = vpop.f32.mrf.mxu0
        %v1240 = vadd.f32 %v694, %v1239
        %v1241 = vpop.f32.mrf.mxu0
        %v1242 = vadd.f32 %v699, %v1241
        %1243 = vmatmul.bf16.gmra.mxu0 %v749
        %v1244 = vpop.f32.mrf.mxu0
        %v1245 = vadd.f32 %v704, %v1244
        %v1246 = vpop.f32.mrf.mxu0
        %v1247 = vadd.f32 %v709, %v1246
        %1248 = vmatmul.bf16.gmra.mxu0 %v752
        %v1249 = vpop.f32.mrf.mxu0
        %v1250 = vadd.f32 %v714, %v1249
        %v1251 = vpop.f32.mrf.mxu0
        %v1252 = vadd.f32 %v719, %v1251
        %1253 = vdwg.mxu0
        %1254 = vmatpush.bf16.xpose.msra.mxu0 %v872
        %1255 = vmatpush.bf16.xpose.msra.mxu0 %v869
        %1256 = vmatpush.bf16.xpose.msra.mxu0 %v866
        %1257 = vmatpush.bf16.xpose.msra.mxu0 %v863
        %1258 = vmatpush.bf16.xpose.msra.mxu0 %v860
        %1259 = vmatpush.bf16.xpose.msra.mxu0 %v857
        %1260 = vmatpush.bf16.xpose.msra.mxu0 %v854
        %1261 = vmatpush.bf16.xpose.msra.mxu0 %v851
        %1262 = vmatmul.bf16.gmra.mxu0 %v743
        %v1263 = vpop.f32.mrf.mxu0
        %v1264 = vadd.f32 %v684, %v1263
        %v1265 = vpop.f32.mrf.mxu0
        %v1266 = vadd.f32 %v689, %v1265
        %1267 = vmatmul.bf16.gmra.mxu0 %v746
        %v1268 = vpop.f32.mrf.mxu0
        %v1269 = vadd.f32 %v694, %v1268
        %v1270 = vpop.f32.mrf.mxu0
        %v1271 = vadd.f32 %v699, %v1270
        %1272 = vmatmul.bf16.gmra.mxu0 %v749
        %v1273 = vpop.f32.mrf.mxu0
        %v1274 = vadd.f32 %v704, %v1273
        %v1275 = vpop.f32.mrf.mxu0
        %v1276 = vadd.f32 %v709, %v1275
        %1277 = vmatmul.bf16.gmra.mxu0 %v752
        %v1278 = vpop.f32.mrf.mxu0
        %v1279 = vadd.f32 %v714, %v1278
        %v1280 = vpop.f32.mrf.mxu0
        %v1281 = vadd.f32 %v719, %v1280
        %1282 = vdwg.mxu0
        %1283 = vmatpush.bf16.xpose.msra.mxu0 %v896
        %1284 = vmatpush.bf16.xpose.msra.mxu0 %v893
        %1285 = vmatpush.bf16.xpose.msra.mxu0 %v890
        %1286 = vmatpush.bf16.xpose.msra.mxu0 %v887
        %1287 = vmatpush.bf16.xpose.msra.mxu0 %v884
        %1288 = vmatpush.bf16.xpose.msra.mxu0 %v881
        %1289 = vmatpush.bf16.xpose.msra.mxu0 %v878
        %1290 = vmatpush.bf16.xpose.msra.mxu0 %v875
        %1291 = vmatmul.bf16.gmra.mxu0 %v743
        %v1292 = vpop.f32.mrf.mxu0
        %v1293 = vadd.f32 %v684, %v1292
        %v1294 = vpop.f32.mrf.mxu0
        %v1295 = vadd.f32 %v689, %v1294
        %1296 = vmatmul.bf16.gmra.mxu0 %v746
        %v1297 = vpop.f32.mrf.mxu0
        %v1298 = vadd.f32 %v694, %v1297
        %v1299 = vpop.f32.mrf.mxu0
        %v1300 = vadd.f32 %v699, %v1299
        %1301 = vmatmul.bf16.gmra.mxu0 %v749
        %v1302 = vpop.f32.mrf.mxu0
        %v1303 = vadd.f32 %v704, %v1302
        %v1304 = vpop.f32.mrf.mxu0
        %v1305 = vadd.f32 %v709, %v1304
        %1306 = vmatmul.bf16.gmra.mxu0 %v752
        %v1307 = vpop.f32.mrf.mxu0
        %v1308 = vadd.f32 %v714, %v1307
        %v1309 = vpop.f32.mrf.mxu0
        %v1310 = vadd.f32 %v719, %v1309
        %1311 = vdwg.mxu0
        %1312 = vmatpush.bf16.xpose.msra.mxu0 %v920
        %1313 = vmatpush.bf16.xpose.msra.mxu0 %v917
        %1314 = vmatpush.bf16.xpose.msra.mxu0 %v914
        %1315 = vmatpush.bf16.xpose.msra.mxu0 %v911
        %1316 = vmatpush.bf16.xpose.msra.mxu0 %v908
        %1317 = vmatpush.bf16.xpose.msra.mxu0 %v905
        %1318 = vmatpush.bf16.xpose.msra.mxu0 %v902
        %1319 = vmatpush.bf16.xpose.msra.mxu0 %v899
        %1320 = vmatmul.bf16.gmra.mxu0 %v743
        %v1321 = vpop.f32.mrf.mxu0
        %v1322 = vadd.f32 %v684, %v1321
        %v1323 = vpop.f32.mrf.mxu0
        %v1324 = vadd.f32 %v689, %v1323
        %1325 = vmatmul.bf16.gmra.mxu0 %v746
        %v1326 = vpop.f32.mrf.mxu0
        %v1327 = vadd.f32 %v694, %v1326
        %v1328 = vpop.f32.mrf.mxu0
        %v1329 = vadd.f32 %v699, %v1328
        %1330 = vmatmul.bf16.gmra.mxu0 %v749
        %v1331 = vpop.f32.mrf.mxu0
        %v1332 = vadd.f32 %v704, %v1331
        %v1333 = vpop.f32.mrf.mxu0
        %v1334 = vadd.f32 %v709, %v1333
        %1335 = vmatmul.bf16.gmra.mxu0 %v752
        %v1336 = vpop.f32.mrf.mxu0
        %v1337 = vadd.f32 %v714, %v1336
        %v1338 = vpop.f32.mrf.mxu0
        %v1339 = vadd.f32 %v719, %v1338
        %1340 = vdwg.mxu0
        %1341 = vmatpush.bf16.xpose.msra.mxu0 %v944
        %1342 = vmatpush.bf16.xpose.msra.mxu0 %v941
        %1343 = vmatpush.bf16.xpose.msra.mxu0 %v938
        %1344 = vmatpush.bf16.xpose.msra.mxu0 %v935
        %1345 = vmatpush.bf16.xpose.msra.mxu0 %v932
        %1346 = vmatpush.bf16.xpose.msra.mxu0 %v929
        %1347 = vmatpush.bf16.xpose.msra.mxu0 %v926
        %1348 = vmatpush.bf16.xpose.msra.mxu0 %v923
        %1349 = vmatmul.bf16.gmra.mxu0 %v743
        %v1350 = vpop.f32.mrf.mxu0
        %v1351 = vadd.f32 %v684, %v1350
        %v1352 = vpop.f32.mrf.mxu0
        %v1353 = vadd.f32 %v689, %v1352
        %1354 = vmatmul.bf16.gmra.mxu0 %v746
        %v1355 = vpop.f32.mrf.mxu0
        %v1356 = vadd.f32 %v694, %v1355
        %v1357 = vpop.f32.mrf.mxu0
        %v1358 = vadd.f32 %v699, %v1357
        %1359 = vmatmul.bf16.gmra.mxu0 %v749
        %v1360 = vpop.f32.mrf.mxu0
        %v1361 = vadd.f32 %v704, %v1360
        %v1362 = vpop.f32.mrf.mxu0
        %v1363 = vadd.f32 %v709, %v1362
        %1364 = vmatmul.bf16.gmra.mxu0 %v752
        %v1365 = vpop.f32.mrf.mxu0
        %v1366 = vadd.f32 %v714, %v1365
        %v1367 = vpop.f32.mrf.mxu0
        %v1368 = vadd.f32 %v719, %v1367
        %1369 = vdwg.mxu0
        %1370 = vmatpush.bf16.xpose.msra.mxu0 %v968
        %1371 = vmatpush.bf16.xpose.msra.mxu0 %v965
        %1372 = vmatpush.bf16.xpose.msra.mxu0 %v962
        %1373 = vmatpush.bf16.xpose.msra.mxu0 %v959
        %1374 = vmatpush.bf16.xpose.msra.mxu0 %v956
        %1375 = vmatpush.bf16.xpose.msra.mxu0 %v953
        %1376 = vmatpush.bf16.xpose.msra.mxu0 %v950
        %1377 = vmatpush.bf16.xpose.msra.mxu0 %v947
        %1378 = vmatmul.bf16.gmra.mxu0 %v743
        %v1379 = vpop.f32.mrf.mxu0
        %v1380 = vadd.f32 %v684, %v1379
        %v1381 = vpop.f32.mrf.mxu0
        %v1382 = vadd.f32 %v689, %v1381
        %1383 = vmatmul.bf16.gmra.mxu0 %v746
        %v1384 = vpop.f32.mrf.mxu0
        %v1385 = vadd.f32 %v694, %v1384
        %v1386 = vpop.f32.mrf.mxu0
        %v1387 = vadd.f32 %v699, %v1386
        %1388 = vmatmul.bf16.gmra.mxu0 %v749
        %v1389 = vpop.f32.mrf.mxu0
        %v1390 = vadd.f32 %v704, %v1389
        %v1391 = vpop.f32.mrf.mxu0
        %v1392 = vadd.f32 %v709, %v1391
        %1393 = vmatmul.bf16.gmra.mxu0 %v752
        %v1394 = vpop.f32.mrf.mxu0
        %v1395 = vadd.f32 %v714, %v1394
        %v1396 = vpop.f32.mrf.mxu0
        %v1397 = vadd.f32 %v719, %v1396
        %1398 = vdwg.mxu0
        %1399 = vmatpush.bf16.xpose.msra.mxu0 %v992
        %1400 = vmatpush.bf16.xpose.msra.mxu0 %v989
        %1401 = vmatpush.bf16.xpose.msra.mxu0 %v986
        %1402 = vmatpush.bf16.xpose.msra.mxu0 %v983
        %1403 = vmatpush.bf16.xpose.msra.mxu0 %v980
        %1404 = vmatpush.bf16.xpose.msra.mxu0 %v977
        %1405 = vmatpush.bf16.xpose.msra.mxu0 %v974
        %1406 = vmatpush.bf16.xpose.msra.mxu0 %v971
        %1407 = vmatmul.bf16.gmra.mxu0 %v743
        %v1408 = vpop.f32.mrf.mxu0
        %v1409 = vadd.f32 %v684, %v1408
        %v1410 = vpop.f32.mrf.mxu0
        %v1411 = vadd.f32 %v689, %v1410
        %1412 = vmatmul.bf16.gmra.mxu0 %v746
        %v1413 = vpop.f32.mrf.mxu0
        %v1414 = vadd.f32 %v694, %v1413
        %v1415 = vpop.f32.mrf.mxu0
        %v1416 = vadd.f32 %v699, %v1415
        %1417 = vmatmul.bf16.gmra.mxu0 %v749
        %v1418 = vpop.f32.mrf.mxu0
        %v1419 = vadd.f32 %v704, %v1418
        %v1420 = vpop.f32.mrf.mxu0
        %v1421 = vadd.f32 %v709, %v1420
        %1422 = vmatmul.bf16.gmra.mxu0 %v752
        %v1423 = vpop.f32.mrf.mxu0
        %v1424 = vadd.f32 %v714, %v1423
        %v1425 = vpop.f32.mrf.mxu0
        %v1426 = vadd.f32 %v719, %v1425
        %1427 = vdwg.mxu0
        %1428 = vmatpush.bf16.xpose.msra.mxu0 %v1016
        %1429 = vmatpush.bf16.xpose.msra.mxu0 %v1013
        %1430 = vmatpush.bf16.xpose.msra.mxu0 %v1010
        %1431 = vmatpush.bf16.xpose.msra.mxu0 %v1007
        %1432 = vmatpush.bf16.xpose.msra.mxu0 %v1004
        %1433 = vmatpush.bf16.xpose.msra.mxu0 %v1001
        %1434 = vmatpush.bf16.xpose.msra.mxu0 %v998
        %1435 = vmatpush.bf16.xpose.msra.mxu0 %v995
        %1436 = vmatmul.bf16.gmra.mxu0 %v743
        %v1437 = vpop.f32.mrf.mxu0
        %v1438 = vadd.f32 %v684, %v1437
        %v1439 = vpop.f32.mrf.mxu0
        %v1440 = vadd.f32 %v689, %v1439
        %1441 = vmatmul.bf16.gmra.mxu0 %v746
        %v1442 = vpop.f32.mrf.mxu0
        %v1443 = vadd.f32 %v694, %v1442
        %v1444 = vpop.f32.mrf.mxu0
        %v1445 = vadd.f32 %v699, %v1444
        %1446 = vmatmul.bf16.gmra.mxu0 %v749
        %v1447 = vpop.f32.mrf.mxu0
        %v1448 = vadd.f32 %v704, %v1447
        %v1449 = vpop.f32.mrf.mxu0
        %v1450 = vadd.f32 %v709, %v1449
        %1451 = vmatmul.bf16.gmra.mxu0 %v752
        %v1452 = vpop.f32.mrf.mxu0
        %v1453 = vadd.f32 %v714, %v1452
        %v1454 = vpop.f32.mrf.mxu0
        %v1455 = vadd.f32 %v719, %v1454
        %1456 = vdwg.mxu0
        %1457 = vmatpush.bf16.xpose.msra.mxu0 %v1040
        %1458 = vmatpush.bf16.xpose.msra.mxu0 %v1037
        %1459 = vmatpush.bf16.xpose.msra.mxu0 %v1034
        %1460 = vmatpush.bf16.xpose.msra.mxu0 %v1031
        %1461 = vmatpush.bf16.xpose.msra.mxu0 %v1028
        %1462 = vmatpush.bf16.xpose.msra.mxu0 %v1025
        %1463 = vmatpush.bf16.xpose.msra.mxu0 %v1022
        %1464 = vmatpush.bf16.xpose.msra.mxu0 %v1019
        %1465 = vmatmul.bf16.gmra.mxu0 %v743
        %v1466 = vpop.f32.mrf.mxu0
        %v1467 = vadd.f32 %v684, %v1466
        %v1468 = vpop.f32.mrf.mxu0
        %v1469 = vadd.f32 %v689, %v1468
        %1470 = vmatmul.bf16.gmra.mxu0 %v746
        %v1471 = vpop.f32.mrf.mxu0
        %v1472 = vadd.f32 %v694, %v1471
        %v1473 = vpop.f32.mrf.mxu0
        %v1474 = vadd.f32 %v699, %v1473
        %1475 = vmatmul.bf16.gmra.mxu0 %v749
        %v1476 = vpop.f32.mrf.mxu0
        %v1477 = vadd.f32 %v704, %v1476
        %v1478 = vpop.f32.mrf.mxu0
        %v1479 = vadd.f32 %v709, %v1478
        %1480 = vmatmul.bf16.gmra.mxu0 %v752
        %v1481 = vpop.f32.mrf.mxu0
        %v1482 = vadd.f32 %v714, %v1481
        %v1483 = vpop.f32.mrf.mxu0
        %v1484 = vadd.f32 %v719, %v1483
        %1485 = vdwg.mxu0
        %1486 = vmatpush.bf16.xpose.msra.mxu0 %v1064
        %1487 = vmatpush.bf16.xpose.msra.mxu0 %v1061
        %1488 = vmatpush.bf16.xpose.msra.mxu0 %v1058
        %1489 = vmatpush.bf16.xpose.msra.mxu0 %v1055
        %1490 = vmatpush.bf16.xpose.msra.mxu0 %v1052
        %1491 = vmatpush.bf16.xpose.msra.mxu0 %v1049
        %1492 = vmatpush.bf16.xpose.msra.mxu0 %v1046
        %1493 = vmatpush.bf16.xpose.msra.mxu0 %v1043
        %1494 = vmatmul.bf16.gmra.mxu0 %v743
        %v1495 = vpop.f32.mrf.mxu0
        %v1496 = vadd.f32 %v684, %v1495
        %v1497 = vpop.f32.mrf.mxu0
        %v1498 = vadd.f32 %v689, %v1497
        %1499 = vmatmul.bf16.gmra.mxu0 %v746
        %v1500 = vpop.f32.mrf.mxu0
        %v1501 = vadd.f32 %v694, %v1500
        %v1502 = vpop.f32.mrf.mxu0
        %v1503 = vadd.f32 %v699, %v1502
        %1504 = vmatmul.bf16.gmra.mxu0 %v749
        %v1505 = vpop.f32.mrf.mxu0
        %v1506 = vadd.f32 %v704, %v1505
        %v1507 = vpop.f32.mrf.mxu0
        %v1508 = vadd.f32 %v709, %v1507
        %1509 = vmatmul.bf16.gmra.mxu0 %v752
        %v1510 = vpop.f32.mrf.mxu0
        %v1511 = vadd.f32 %v714, %v1510
        %v1512 = vpop.f32.mrf.mxu0
        %v1513 = vadd.f32 %v719, %v1512
        %1514 = vdwg.mxu0
        %1515 = vmatpush.bf16.xpose.msra.mxu0 %v1088
        %1516 = vmatpush.bf16.xpose.msra.mxu0 %v1085
        %1517 = vmatpush.bf16.xpose.msra.mxu0 %v1082
        %1518 = vmatpush.bf16.xpose.msra.mxu0 %v1079
        %1519 = vmatpush.bf16.xpose.msra.mxu0 %v1076
        %1520 = vmatpush.bf16.xpose.msra.mxu0 %v1073
        %1521 = vmatpush.bf16.xpose.msra.mxu0 %v1070
        %1522 = vmatpush.bf16.xpose.msra.mxu0 %v1067
        %1523 = vmatmul.bf16.gmra.mxu0 %v743
        %v1524 = vpop.f32.mrf.mxu0
        %v1525 = vadd.f32 %v684, %v1524
        %v1526 = vpop.f32.mrf.mxu0
        %v1527 = vadd.f32 %v689, %v1526
        %1528 = vmatmul.bf16.gmra.mxu0 %v746
        %v1529 = vpop.f32.mrf.mxu0
        %v1530 = vadd.f32 %v694, %v1529
        %v1531 = vpop.f32.mrf.mxu0
        %v1532 = vadd.f32 %v699, %v1531
        %1533 = vmatmul.bf16.gmra.mxu0 %v749
        %v1534 = vpop.f32.mrf.mxu0
        %v1535 = vadd.f32 %v704, %v1534
        %v1536 = vpop.f32.mrf.mxu0
        %v1537 = vadd.f32 %v709, %v1536
        %1538 = vmatmul.bf16.gmra.mxu0 %v752
        %v1539 = vpop.f32.mrf.mxu0
        %v1540 = vadd.f32 %v714, %v1539
        %v1541 = vpop.f32.mrf.mxu0
        %v1542 = vadd.f32 %v719, %v1541
        %1543 = vdwg.mxu0
        %1544 = vmatpush.bf16.xpose.msra.mxu0 %v1112
        %1545 = vmatpush.bf16.xpose.msra.mxu0 %v1109
        %1546 = vmatpush.bf16.xpose.msra.mxu0 %v1106
        %1547 = vmatpush.bf16.xpose.msra.mxu0 %v1103
        %1548 = vmatpush.bf16.xpose.msra.mxu0 %v1100
        %1549 = vmatpush.bf16.xpose.msra.mxu0 %v1097
        %1550 = vmatpush.bf16.xpose.msra.mxu0 %v1094
        %1551 = vmatpush.bf16.xpose.msra.mxu0 %v1091
        %1552 = vmatmul.bf16.gmra.mxu0 %v743
        %v1553 = vpop.f32.mrf.mxu0
        %v1554 = vadd.f32 %v684, %v1553
        %v1555 = vpop.f32.mrf.mxu0
        %v1556 = vadd.f32 %v689, %v1555
        %1557 = vmatmul.bf16.gmra.mxu0 %v746
        %v1558 = vpop.f32.mrf.mxu0
        %v1559 = vadd.f32 %v694, %v1558
        %v1560 = vpop.f32.mrf.mxu0
        %v1561 = vadd.f32 %v699, %v1560
        %1562 = vmatmul.bf16.gmra.mxu0 %v749
        %v1563 = vpop.f32.mrf.mxu0
        %v1564 = vadd.f32 %v704, %v1563
        %v1565 = vpop.f32.mrf.mxu0
        %v1566 = vadd.f32 %v709, %v1565
        %1567 = vmatmul.bf16.gmra.mxu0 %v752
        %v1568 = vpop.f32.mrf.mxu0
        %v1569 = vadd.f32 %v714, %v1568
        %v1570 = vpop.f32.mrf.mxu0
        %v1571 = vadd.f32 %v719, %v1570
        %1572 = vdwg.mxu0
        %1573 = vmatpush.bf16.xpose.msra.mxu0 %v1136
        %1574 = vmatpush.bf16.xpose.msra.mxu0 %v1133
        %1575 = vmatpush.bf16.xpose.msra.mxu0 %v1130
        %1576 = vmatpush.bf16.xpose.msra.mxu0 %v1127
        %1577 = vmatpush.bf16.xpose.msra.mxu0 %v1124
        %1578 = vmatpush.bf16.xpose.msra.mxu0 %v1121
        %1579 = vmatpush.bf16.xpose.msra.mxu0 %v1118
        %1580 = vmatpush.bf16.xpose.msra.mxu0 %v1115
        %1581 = vmatmul.bf16.gmra.mxu0 %v743
        %v1582 = vpop.f32.mrf.mxu0
        %v1583 = vadd.f32 %v684, %v1582
        %v1584 = vpop.f32.mrf.mxu0
        %v1585 = vadd.f32 %v689, %v1584
        %1586 = vmatmul.bf16.gmra.mxu0 %v746
        %v1587 = vpop.f32.mrf.mxu0
        %v1588 = vadd.f32 %v694, %v1587
        %v1589 = vpop.f32.mrf.mxu0
        %v1590 = vadd.f32 %v699, %v1589
        %1591 = vmatmul.bf16.gmra.mxu0 %v749
        %v1592 = vpop.f32.mrf.mxu0
        %v1593 = vadd.f32 %v704, %v1592
        %v1594 = vpop.f32.mrf.mxu0
        %v1595 = vadd.f32 %v709, %v1594
        %1596 = vmatmul.bf16.gmra.mxu0 %v752
        %v1597 = vpop.f32.mrf.mxu0
        %v1598 = vadd.f32 %v714, %v1597
        %v1599 = vpop.f32.mrf.mxu0
        %v1600 = vadd.f32 %v719, %v1599
        %1601 = vdwg.mxu0
        %v1602 = vmax.f32 %v1148, 0.0
        %v1603 = vmax.f32 %v1177, 0.0
        %v1604 = vmax.f32 %v1206, 0.0
        %v1605 = vmax.f32 %v1235, 0.0
        %v1606 = vmax.f32 %v1264, 0.0
        %v1607 = vmax.f32 %v1293, 0.0
        %v1608 = vmax.f32 %v1322, 0.0
        %v1609 = vmax.f32 %v1351, 0.0
        %v1610 = vmax.f32 %v1380, 0.0
        %v1611 = vmax.f32 %v1409, 0.0
        %v1612 = vmax.f32 %v1438, 0.0
        %v1613 = vmax.f32 %v1467, 0.0
        %v1614 = vmax.f32 %v1496, 0.0
        %v1615 = vmax.f32 %v1525, 0.0
        %v1616 = vmax.f32 %v1554, 0.0
        %v1617 = vmax.f32 %v1583, 0.0
        %v1618 = vmax.f32 %v1150, 0.0
        %v1619 = vmax.f32 %v1179, 0.0
        %v1620 = vmax.f32 %v1208, 0.0
        %v1621 = vmax.f32 %v1237, 0.0
        %v1622 = vmax.f32 %v1266, 0.0
        %v1623 = vmax.f32 %v1295, 0.0
        %v1624 = vmax.f32 %v1324, 0.0
        %v1625 = vmax.f32 %v1353, 0.0
        %v1626 = vmax.f32 %v1382, 0.0
        %v1627 = vmax.f32 %v1411, 0.0
        %v1628 = vmax.f32 %v1440, 0.0
        %v1629 = vmax.f32 %v1469, 0.0
        %v1630 = vmax.f32 %v1498, 0.0
        %v1631 = vmax.f32 %v1527, 0.0
        %v1632 = vmax.f32 %v1556, 0.0
        %v1633 = vmax.f32 %v1585, 0.0
        %v1634 = vmax.f32 %v1153, 0.0
        %v1635 = vmax.f32 %v1182, 0.0
        %v1636 = vmax.f32 %v1211, 0.0
        %v1637 = vmax.f32 %v1240, 0.0
        %v1638 = vmax.f32 %v1269, 0.0
        %v1639 = vmax.f32 %v1298, 0.0
        %v1640 = vmax.f32 %v1327, 0.0
        %v1641 = vmax.f32 %v1356, 0.0
        %v1642 = vmax.f32 %v1385, 0.0
        %v1643 = vmax.f32 %v1414, 0.0
        %v1644 = vmax.f32 %v1443, 0.0
        %v1645 = vmax.f32 %v1472, 0.0
        %v1646 = vmax.f32 %v1501, 0.0
        %v1647 = vmax.f32 %v1530, 0.0
        %v1648 = vmax.f32 %v1559, 0.0
        %v1649 = vmax.f32 %v1588, 0.0
        %v1650 = vmax.f32 %v1155, 0.0
        %v1651 = vmax.f32 %v1184, 0.0
        %v1652 = vmax.f32 %v1213, 0.0
        %v1653 = vmax.f32 %v1242, 0.0
        %v1654 = vmax.f32 %v1271, 0.0
        %v1655 = vmax.f32 %v1300, 0.0
        %v1656 = vmax.f32 %v1329, 0.0
        %v1657 = vmax.f32 %v1358, 0.0
        %v1658 = vmax.f32 %v1387, 0.0
        %v1659 = vmax.f32 %v1416, 0.0
        %v1660 = vmax.f32 %v1445, 0.0
        %v1661 = vmax.f32 %v1474, 0.0
        %v1662 = vmax.f32 %v1503, 0.0
        %v1663 = vmax.f32 %v1532, 0.0
        %v1664 = vmax.f32 %v1561, 0.0
        %v1665 = vmax.f32 %v1590, 0.0
        %v1666 = vmax.f32 %v1158, 0.0
        %v1667 = vmax.f32 %v1187, 0.0
        %v1668 = vmax.f32 %v1216, 0.0
        %v1669 = vmax.f32 %v1245, 0.0
        %v1670 = vmax.f32 %v1274, 0.0
        %v1671 = vmax.f32 %v1303, 0.0
        %v1672 = vmax.f32 %v1332, 0.0
        %v1673 = vmax.f32 %v1361, 0.0
        %v1674 = vmax.f32 %v1390, 0.0
        %v1675 = vmax.f32 %v1419, 0.0
        %v1676 = vmax.f32 %v1448, 0.0
        %v1677 = vmax.f32 %v1477, 0.0
        %v1678 = vmax.f32 %v1506, 0.0
        %v1679 = vmax.f32 %v1535, 0.0
        %v1680 = vmax.f32 %v1564, 0.0
        %v1681 = vmax.f32 %v1593, 0.0
        %v1682 = vmax.f32 %v1160, 0.0
        %v1683 = vmax.f32 %v1189, 0.0
        %v1684 = vmax.f32 %v1218, 0.0
        %v1685 = vmax.f32 %v1247, 0.0
        %v1686 = vmax.f32 %v1276, 0.0
        %v1687 = vmax.f32 %v1305, 0.0
        %v1688 = vmax.f32 %v1334, 0.0
        %v1689 = vmax.f32 %v1363, 0.0
        %v1690 = vmax.f32 %v1392, 0.0
        %v1691 = vmax.f32 %v1421, 0.0
        %v1692 = vmax.f32 %v1450, 0.0
        %v1693 = vmax.f32 %v1479, 0.0
        %v1694 = vmax.f32 %v1508, 0.0
        %v1695 = vmax.f32 %v1537, 0.0
        %v1696 = vmax.f32 %v1566, 0.0
        %v1697 = vmax.f32 %v1595, 0.0
        %v1698 = vmax.f32 %v1163, 0.0
        %v1699 = vmax.f32 %v1192, 0.0
        %v1700 = vmax.f32 %v1221, 0.0
        %v1701 = vmax.f32 %v1250, 0.0
        %v1702 = vmax.f32 %v1279, 0.0
        %v1703 = vmax.f32 %v1308, 0.0
        %v1704 = vmax.f32 %v1337, 0.0
        %v1705 = vmax.f32 %v1366, 0.0
        %v1706 = vmax.f32 %v1395, 0.0
        %v1707 = vmax.f32 %v1424, 0.0
        %v1708 = vmax.f32 %v1453, 0.0
        %v1709 = vmax.f32 %v1482, 0.0
        %v1710 = vmax.f32 %v1511, 0.0
        %v1711 = vmax.f32 %v1540, 0.0
        %v1712 = vmax.f32 %v1569, 0.0
        %v1713 = vmax.f32 %v1598, 0.0
        %v1714 = vmax.f32 %v1165, 0.0
        %v1715 = vmax.f32 %v1194, 0.0
        %v1716 = vmax.f32 %v1223, 0.0
        %v1717 = vmax.f32 %v1252, 0.0
        %v1718 = vmax.f32 %v1281, 0.0
        %v1719 = vmax.f32 %v1310, 0.0
        %v1720 = vmax.f32 %v1339, 0.0
        %v1721 = vmax.f32 %v1368, 0.0
        %v1722 = vmax.f32 %v1397, 0.0
        %v1723 = vmax.f32 %v1426, 0.0
        %v1724 = vmax.f32 %v1455, 0.0
        %v1725 = vmax.f32 %v1484, 0.0
        %v1726 = vmax.f32 %v1513, 0.0
        %v1727 = vmax.f32 %v1542, 0.0
        %v1728 = vmax.f32 %v1571, 0.0
        %v1729 = vmax.f32 %v1600, 0.0
        %v1730 = vpack.c.bf16 %v1618, %v1602
        %v1731 = vpack.c.bf16 %v1619, %v1603
        %v1732 = vpack.c.bf16 %v1620, %v1604
        %v1733 = vpack.c.bf16 %v1621, %v1605
        %v1734 = vpack.c.bf16 %v1622, %v1606
        %v1735 = vpack.c.bf16 %v1623, %v1607
        %v1736 = vpack.c.bf16 %v1624, %v1608
        %v1737 = vpack.c.bf16 %v1625, %v1609
        %v1738 = vpack.c.bf16 %v1626, %v1610
        %v1739 = vpack.c.bf16 %v1627, %v1611
        %v1740 = vpack.c.bf16 %v1628, %v1612
        %v1741 = vpack.c.bf16 %v1629, %v1613
        %v1742 = vpack.c.bf16 %v1630, %v1614
        %v1743 = vpack.c.bf16 %v1631, %v1615
        %v1744 = vpack.c.bf16 %v1632, %v1616
        %v1745 = vpack.c.bf16 %v1633, %v1617
        %v1746 = vpack.c.bf16 %v1650, %v1634
        %v1747 = vpack.c.bf16 %v1651, %v1635
        %v1748 = vpack.c.bf16 %v1652, %v1636
        %v1749 = vpack.c.bf16 %v1653, %v1637
        %v1750 = vpack.c.bf16 %v1654, %v1638
        %v1751 = vpack.c.bf16 %v1655, %v1639
        %v1752 = vpack.c.bf16 %v1656, %v1640
        %v1753 = vpack.c.bf16 %v1657, %v1641
        %v1754 = vpack.c.bf16 %v1658, %v1642
        %v1755 = vpack.c.bf16 %v1659, %v1643
        %v1756 = vpack.c.bf16 %v1660, %v1644
        %v1757 = vpack.c.bf16 %v1661, %v1645
        %v1758 = vpack.c.bf16 %v1662, %v1646
        %v1759 = vpack.c.bf16 %v1663, %v1647
        %v1760 = vpack.c.bf16 %v1664, %v1648
        %v1761 = vpack.c.bf16 %v1665, %v1649
        %v1762 = vpack.c.bf16 %v1682, %v1666
        %v1763 = vpack.c.bf16 %v1683, %v1667
        %v1764 = vpack.c.bf16 %v1684, %v1668
        %v1765 = vpack.c.bf16 %v1685, %v1669
        %v1766 = vpack.c.bf16 %v1686, %v1670
        %v1767 = vpack.c.bf16 %v1687, %v1671
        %v1768 = vpack.c.bf16 %v1688, %v1672
        %v1769 = vpack.c.bf16 %v1689, %v1673
        %v1770 = vpack.c.bf16 %v1690, %v1674
        %v1771 = vpack.c.bf16 %v1691, %v1675
        %v1772 = vpack.c.bf16 %v1692, %v1676
        %v1773 = vpack.c.bf16 %v1693, %v1677
        %v1774 = vpack.c.bf16 %v1694, %v1678
        %v1775 = vpack.c.bf16 %v1695, %v1679
        %v1776 = vpack.c.bf16 %v1696, %v1680
        %v1777 = vpack.c.bf16 %v1697, %v1681
        %v1778 = vpack.c.bf16 %v1714, %v1698
        %v1779 = vpack.c.bf16 %v1715, %v1699
        %v1780 = vpack.c.bf16 %v1716, %v1700
        %v1781 = vpack.c.bf16 %v1717, %v1701
        %v1782 = vpack.c.bf16 %v1718, %v1702
        %v1783 = vpack.c.bf16 %v1719, %v1703
        %v1784 = vpack.c.bf16 %v1720, %v1704
        %v1785 = vpack.c.bf16 %v1721, %v1705
        %v1786 = vpack.c.bf16 %v1722, %v1706
        %v1787 = vpack.c.bf16 %v1723, %v1707
        %v1788 = vpack.c.bf16 %v1724, %v1708
        %v1789 = vpack.c.bf16 %v1725, %v1709
        %v1790 = vpack.c.bf16 %v1726, %v1710
        %v1791 = vpack.c.bf16 %v1727, %v1711
        %v1792 = vpack.c.bf16 %v1728, %v1712
        %v1793 = vpack.c.bf16 %v1729, %v1713
        %v1794 = vld [vmem:[%s3] sm:$0xf]
        %v1795 = vld [vmem:[%s3 + $0x4] sm:$0xf]
        %v1796 = vld [vmem:[%s3 + $0x8] sm:$0xf]
        %v1797 = vld [vmem:[%s3 + $0xc] sm:$0xf]
        %v1798 = vld [vmem:[%s3 + $0x10] sm:$0xf]
        %v1799 = vld [vmem:[%s3 + $0x14] sm:$0xf]
        %v1800 = vld [vmem:[%s3 + $0x18] sm:$0xf]
        %v1801 = vld [vmem:[%s3 + $0x1c] sm:$0xf]
        %v1802 = vld [vmem:[%s4] sm:$0xff]
        %v1803 = vld [vmem:[%s4 + $0x8] sm:$0xff]
        %v1804 = vld [vmem:[%s4 + $0x10] sm:$0xff]
        %v1805 = vld [vmem:[%s4 + $0x18] sm:$0xff]
        %v1806 = vld [vmem:[%s4 + $0x20] sm:$0xff]
        %v1807 = vld [vmem:[%s4 + $0x28] sm:$0xff]
        %v1808 = vld [vmem:[%s4 + $0x30] sm:$0xff]
        %v1809 = vld [vmem:[%s4 + $0x38] sm:$0xff]
        %1811 = vset.pattern.permute.xlu0 0
        %1812 = vperm.xlu0 %1811, %v1802
        %v1813 = vpop.permute.xlu0 %1812
        %1816 = vset.pattern.permute.xlu0 0
        %1817 = vperm.xlu0 %1816, %v1803
        %v1818 = vpop.permute.xlu0 %1817
        %1821 = vset.pattern.permute.xlu0 0
        %1822 = vperm.xlu0 %1821, %v1804
        %v1823 = vpop.permute.xlu0 %1822
        %1826 = vset.pattern.permute.xlu0 0
        %1827 = vperm.xlu0 %1826, %v1805
        %v1828 = vpop.permute.xlu0 %1827
        %1831 = vset.pattern.permute.xlu0 0
        %1832 = vperm.xlu0 %1831, %v1806
        %v1833 = vpop.permute.xlu0 %1832
        %1836 = vset.pattern.permute.xlu0 0
        %1837 = vperm.xlu0 %1836, %v1807
        %v1838 = vpop.permute.xlu0 %1837
        %1841 = vset.pattern.permute.xlu0 0
        %1842 = vperm.xlu0 %1841, %v1808
        %v1843 = vpop.permute.xlu0 %1842
        %1846 = vset.pattern.permute.xlu0 0
        %1847 = vperm.xlu0 %1846, %v1809
        %v1848 = vpop.permute.xlu0 %1847
        %v1858 = vunpack.c.l.b16 %v1794
        %v1859 = vunpack.c.l.b16 %v1795
        %v1860 = vunpack.c.l.b16 %v1796
        %v1861 = vunpack.c.l.b16 %v1797
        %v1862 = vunpack.c.l.b16 %v1798
        %v1863 = vunpack.c.l.b16 %v1799
        %v1864 = vunpack.c.l.b16 %v1800
        %v1865 = vunpack.c.l.b16 %v1801
        %v1866 = vpack.c.b16 %v1859, %v1858
        %v1867 = vpack.c.b16 %v1861, %v1860
        %v1868 = vpack.c.b16 %v1863, %v1862
        %v1869 = vpack.c.b16 %v1865, %v1864
        %vm1870 = vcmask 523264
        %v1872 = vsel %vm1870, %v1866, 0
        %v1875 = vsel %vm1870, %v1867, 0
        %v1878 = vsel %vm1870, %v1868, 0
        %v1881 = vsel %vm1870, %v1869, 0
        %1883 = vmatpush.bf16.msra.mxu0 0
        %1884 = vmatpush.bf16.msra.mxu0 0
        %1885 = vmatpush.bf16.msra.mxu0 0
        %1886 = vmatpush.bf16.msra.mxu0 0
        %1887 = vmatpush.bf16.msra.mxu0 %v1778
        %1888 = vmatpush.bf16.msra.mxu0 %v1762
        %1889 = vmatpush.bf16.msra.mxu0 %v1746
        %1890 = vmatpush.bf16.msra.mxu0 %v1730
        %1891 = vmatmul.bf16.gmra.mxu0 %v1872
        %v1892 = vpop.f32.mrf.mxu0
        %v1893 = vadd.f32 %v1813, %v1892
        %v1894 = vpop.f32.mrf.mxu0
        %v1895 = vadd.f32 %v1818, %v1894
        %1896 = vmatmul.bf16.gmra.mxu0 %v1875
        %v1897 = vpop.f32.mrf.mxu0
        %v1898 = vadd.f32 %v1823, %v1897
        %v1899 = vpop.f32.mrf.mxu0
        %v1900 = vadd.f32 %v1828, %v1899
        %1901 = vmatmul.bf16.gmra.mxu0 %v1878
        %v1902 = vpop.f32.mrf.mxu0
        %v1903 = vadd.f32 %v1833, %v1902
        %v1904 = vpop.f32.mrf.mxu0
        %v1905 = vadd.f32 %v1838, %v1904
        %1906 = vmatmul.bf16.gmra.mxu0 %v1881
        %v1907 = vpop.f32.mrf.mxu0
        %v1908 = vadd.f32 %v1843, %v1907
        %v1909 = vpop.f32.mrf.mxu0
        %v1910 = vadd.f32 %v1848, %v1909
        %1911 = vdwg.mxu0
        %1912 = vmatpush.bf16.msra.mxu0 0
        %1913 = vmatpush.bf16.msra.mxu0 0
        %1914 = vmatpush.bf16.msra.mxu0 0
        %1915 = vmatpush.bf16.msra.mxu0 0
        %1916 = vmatpush.bf16.msra.mxu0 %v1779
        %1917 = vmatpush.bf16.msra.mxu0 %v1763
        %1918 = vmatpush.bf16.msra.mxu0 %v1747
        %1919 = vmatpush.bf16.msra.mxu0 %v1731
        %1920 = vmatmul.bf16.gmra.mxu0 %v1872
        %v1921 = vpop.f32.mrf.mxu0
        %v1922 = vadd.f32 %v1813, %v1921
        %v1923 = vpop.f32.mrf.mxu0
        %v1924 = vadd.f32 %v1818, %v1923
        %1925 = vmatmul.bf16.gmra.mxu0 %v1875
        %v1926 = vpop.f32.mrf.mxu0
        %v1927 = vadd.f32 %v1823, %v1926
        %v1928 = vpop.f32.mrf.mxu0
        %v1929 = vadd.f32 %v1828, %v1928
        %1930 = vmatmul.bf16.gmra.mxu0 %v1878
        %v1931 = vpop.f32.mrf.mxu0
        %v1932 = vadd.f32 %v1833, %v1931
        %v1933 = vpop.f32.mrf.mxu0
        %v1934 = vadd.f32 %v1838, %v1933
        %1935 = vmatmul.bf16.gmra.mxu0 %v1881
        %v1936 = vpop.f32.mrf.mxu0
        %v1937 = vadd.f32 %v1843, %v1936
        %v1938 = vpop.f32.mrf.mxu0
        %v1939 = vadd.f32 %v1848, %v1938
        %1940 = vdwg.mxu0
        %1941 = vmatpush.bf16.msra.mxu0 0
        %1942 = vmatpush.bf16.msra.mxu0 0
        %1943 = vmatpush.bf16.msra.mxu0 0
        %1944 = vmatpush.bf16.msra.mxu0 0
        %1945 = vmatpush.bf16.msra.mxu0 %v1780
        %1946 = vmatpush.bf16.msra.mxu0 %v1764
        %1947 = vmatpush.bf16.msra.mxu0 %v1748
        %1948 = vmatpush.bf16.msra.mxu0 %v1732
        %1949 = vmatmul.bf16.gmra.mxu0 %v1872
        %v1950 = vpop.f32.mrf.mxu0
        %v1951 = vadd.f32 %v1813, %v1950
        %v1952 = vpop.f32.mrf.mxu0
        %v1953 = vadd.f32 %v1818, %v1952
        %1954 = vmatmul.bf16.gmra.mxu0 %v1875
        %v1955 = vpop.f32.mrf.mxu0
        %v1956 = vadd.f32 %v1823, %v1955
        %v1957 = vpop.f32.mrf.mxu0
        %v1958 = vadd.f32 %v1828, %v1957
        %1959 = vmatmul.bf16.gmra.mxu0 %v1878
        %v1960 = vpop.f32.mrf.mxu0
        %v1961 = vadd.f32 %v1833, %v1960
        %v1962 = vpop.f32.mrf.mxu0
        %v1963 = vadd.f32 %v1838, %v1962
        %1964 = vmatmul.bf16.gmra.mxu0 %v1881
        %v1965 = vpop.f32.mrf.mxu0
        %v1966 = vadd.f32 %v1843, %v1965
        %v1967 = vpop.f32.mrf.mxu0
        %v1968 = vadd.f32 %v1848, %v1967
        %1969 = vdwg.mxu0
        %1970 = vmatpush.bf16.msra.mxu0 0
        %1971 = vmatpush.bf16.msra.mxu0 0
        %1972 = vmatpush.bf16.msra.mxu0 0
        %1973 = vmatpush.bf16.msra.mxu0 0
        %1974 = vmatpush.bf16.msra.mxu0 %v1781
        %1975 = vmatpush.bf16.msra.mxu0 %v1765
        %1976 = vmatpush.bf16.msra.mxu0 %v1749
        %1977 = vmatpush.bf16.msra.mxu0 %v1733
        %1978 = vmatmul.bf16.gmra.mxu0 %v1872
        %v1979 = vpop.f32.mrf.mxu0
        %v1980 = vadd.f32 %v1813, %v1979
        %v1981 = vpop.f32.mrf.mxu0
        %v1982 = vadd.f32 %v1818, %v1981
        %1983 = vmatmul.bf16.gmra.mxu0 %v1875
        %v1984 = vpop.f32.mrf.mxu0
        %v1985 = vadd.f32 %v1823, %v1984
        %v1986 = vpop.f32.mrf.mxu0
        %v1987 = vadd.f32 %v1828, %v1986
        %1988 = vmatmul.bf16.gmra.mxu0 %v1878
        %v1989 = vpop.f32.mrf.mxu0
        %v1990 = vadd.f32 %v1833, %v1989
        %v1991 = vpop.f32.mrf.mxu0
        %v1992 = vadd.f32 %v1838, %v1991
        %1993 = vmatmul.bf16.gmra.mxu0 %v1881
        %v1994 = vpop.f32.mrf.mxu0
        %v1995 = vadd.f32 %v1843, %v1994
        %v1996 = vpop.f32.mrf.mxu0
        %v1997 = vadd.f32 %v1848, %v1996
        %1998 = vdwg.mxu0
        %1999 = vmatpush.bf16.msra.mxu0 0
        %2000 = vmatpush.bf16.msra.mxu0 0
        %2001 = vmatpush.bf16.msra.mxu0 0
        %2002 = vmatpush.bf16.msra.mxu0 0
        %2003 = vmatpush.bf16.msra.mxu0 %v1782
        %2004 = vmatpush.bf16.msra.mxu0 %v1766
        %2005 = vmatpush.bf16.msra.mxu0 %v1750
        %2006 = vmatpush.bf16.msra.mxu0 %v1734
        %2007 = vmatmul.bf16.gmra.mxu0 %v1872
        %v2008 = vpop.f32.mrf.mxu0
        %v2009 = vadd.f32 %v1813, %v2008
        %v2010 = vpop.f32.mrf.mxu0
        %v2011 = vadd.f32 %v1818, %v2010
        %2012 = vmatmul.bf16.gmra.mxu0 %v1875
        %v2013 = vpop.f32.mrf.mxu0
        %v2014 = vadd.f32 %v1823, %v2013
        %v2015 = vpop.f32.mrf.mxu0
        %v2016 = vadd.f32 %v1828, %v2015
        %2017 = vmatmul.bf16.gmra.mxu0 %v1878
        %v2018 = vpop.f32.mrf.mxu0
        %v2019 = vadd.f32 %v1833, %v2018
        %v2020 = vpop.f32.mrf.mxu0
        %v2021 = vadd.f32 %v1838, %v2020
        %2022 = vmatmul.bf16.gmra.mxu0 %v1881
        %v2023 = vpop.f32.mrf.mxu0
        %v2024 = vadd.f32 %v1843, %v2023
        %v2025 = vpop.f32.mrf.mxu0
        %v2026 = vadd.f32 %v1848, %v2025
        %2027 = vdwg.mxu0
        %2028 = vmatpush.bf16.msra.mxu0 0
        %2029 = vmatpush.bf16.msra.mxu0 0
        %2030 = vmatpush.bf16.msra.mxu0 0
        %2031 = vmatpush.bf16.msra.mxu0 0
        %2032 = vmatpush.bf16.msra.mxu0 %v1783
        %2033 = vmatpush.bf16.msra.mxu0 %v1767
        %2034 = vmatpush.bf16.msra.mxu0 %v1751
        %2035 = vmatpush.bf16.msra.mxu0 %v1735
        %2036 = vmatmul.bf16.gmra.mxu0 %v1872
        %v2037 = vpop.f32.mrf.mxu0
        %v2038 = vadd.f32 %v1813, %v2037
        %v2039 = vpop.f32.mrf.mxu0
        %v2040 = vadd.f32 %v1818, %v2039
        %2041 = vmatmul.bf16.gmra.mxu0 %v1875
        %v2042 = vpop.f32.mrf.mxu0
        %v2043 = vadd.f32 %v1823, %v2042
        %v2044 = vpop.f32.mrf.mxu0
        %v2045 = vadd.f32 %v1828, %v2044
        %2046 = vmatmul.bf16.gmra.mxu0 %v1878
        %v2047 = vpop.f32.mrf.mxu0
        %v2048 = vadd.f32 %v1833, %v2047
        %v2049 = vpop.f32.mrf.mxu0
        %v2050 = vadd.f32 %v1838, %v2049
        %2051 = vmatmul.bf16.gmra.mxu0 %v1881
        %v2052 = vpop.f32.mrf.mxu0
        %v2053 = vadd.f32 %v1843, %v2052
        %v2054 = vpop.f32.mrf.mxu0
        %v2055 = vadd.f32 %v1848, %v2054
        %2056 = vdwg.mxu0
        %2057 = vmatpush.bf16.msra.mxu0 0
        %2058 = vmatpush.bf16.msra.mxu0 0
        %2059 = vmatpush.bf16.msra.mxu0 0
        %2060 = vmatpush.bf16.msra.mxu0 0
        %2061 = vmatpush.bf16.msra.mxu0 %v1784
        %2062 = vmatpush.bf16.msra.mxu0 %v1768
        %2063 = vmatpush.bf16.msra.mxu0 %v1752
        %2064 = vmatpush.bf16.msra.mxu0 %v1736
        %2065 = vmatmul.bf16.gmra.mxu0 %v1872
        %v2066 = vpop.f32.mrf.mxu0
        %v2067 = vadd.f32 %v1813, %v2066
        %v2068 = vpop.f32.mrf.mxu0
        %v2069 = vadd.f32 %v1818, %v2068
        %2070 = vmatmul.bf16.gmra.mxu0 %v1875
        %v2071 = vpop.f32.mrf.mxu0
        %v2072 = vadd.f32 %v1823, %v2071
        %v2073 = vpop.f32.mrf.mxu0
        %v2074 = vadd.f32 %v1828, %v2073
        %2075 = vmatmul.bf16.gmra.mxu0 %v1878
        %v2076 = vpop.f32.mrf.mxu0
        %v2077 = vadd.f32 %v1833, %v2076
        %v2078 = vpop.f32.mrf.mxu0
        %v2079 = vadd.f32 %v1838, %v2078
        %2080 = vmatmul.bf16.gmra.mxu0 %v1881
        %v2081 = vpop.f32.mrf.mxu0
        %v2082 = vadd.f32 %v1843, %v2081
        %v2083 = vpop.f32.mrf.mxu0
        %v2084 = vadd.f32 %v1848, %v2083
        %2085 = vdwg.mxu0
        %2086 = vmatpush.bf16.msra.mxu0 0
        %2087 = vmatpush.bf16.msra.mxu0 0
        %2088 = vmatpush.bf16.msra.mxu0 0
        %2089 = vmatpush.bf16.msra.mxu0 0
        %2090 = vmatpush.bf16.msra.mxu0 %v1785
        %2091 = vmatpush.bf16.msra.mxu0 %v1769
        %2092 = vmatpush.bf16.msra.mxu0 %v1753
        %2093 = vmatpush.bf16.msra.mxu0 %v1737
        %2094 = vmatmul.bf16.gmra.mxu0 %v1872
        %v2095 = vpop.f32.mrf.mxu0
        %v2096 = vadd.f32 %v1813, %v2095
        %v2097 = vpop.f32.mrf.mxu0
        %v2098 = vadd.f32 %v1818, %v2097
        %2099 = vmatmul.bf16.gmra.mxu0 %v1875
        %v2100 = vpop.f32.mrf.mxu0
        %v2101 = vadd.f32 %v1823, %v2100
        %v2102 = vpop.f32.mrf.mxu0
        %v2103 = vadd.f32 %v1828, %v2102
        %2104 = vmatmul.bf16.gmra.mxu0 %v1878
        %v2105 = vpop.f32.mrf.mxu0
        %v2106 = vadd.f32 %v1833, %v2105
        %v2107 = vpop.f32.mrf.mxu0
        %v2108 = vadd.f32 %v1838, %v2107
        %2109 = vmatmul.bf16.gmra.mxu0 %v1881
        %v2110 = vpop.f32.mrf.mxu0
        %v2111 = vadd.f32 %v1843, %v2110
        %v2112 = vpop.f32.mrf.mxu0
        %v2113 = vadd.f32 %v1848, %v2112
        %2114 = vdwg.mxu0
        %2115 = vmatpush.bf16.msra.mxu0 0
        %2116 = vmatpush.bf16.msra.mxu0 0
        %2117 = vmatpush.bf16.msra.mxu0 0
        %2118 = vmatpush.bf16.msra.mxu0 0
        %2119 = vmatpush.bf16.msra.mxu0 %v1786
        %2120 = vmatpush.bf16.msra.mxu0 %v1770
        %2121 = vmatpush.bf16.msra.mxu0 %v1754
        %2122 = vmatpush.bf16.msra.mxu0 %v1738
        %2123 = vmatmul.bf16.gmra.mxu0 %v1872
        %v2124 = vpop.f32.mrf.mxu0
        %v2125 = vadd.f32 %v1813, %v2124
        %v2126 = vpop.f32.mrf.mxu0
        %v2127 = vadd.f32 %v1818, %v2126
        %2128 = vmatmul.bf16.gmra.mxu0 %v1875
        %v2129 = vpop.f32.mrf.mxu0
        %v2130 = vadd.f32 %v1823, %v2129
        %v2131 = vpop.f32.mrf.mxu0
        %v2132 = vadd.f32 %v1828, %v2131
        %2133 = vmatmul.bf16.gmra.mxu0 %v1878
        %v2134 = vpop.f32.mrf.mxu0
        %v2135 = vadd.f32 %v1833, %v2134
        %v2136 = vpop.f32.mrf.mxu0
        %v2137 = vadd.f32 %v1838, %v2136
        %2138 = vmatmul.bf16.gmra.mxu0 %v1881
        %v2139 = vpop.f32.mrf.mxu0
        %v2140 = vadd.f32 %v1843, %v2139
        %v2141 = vpop.f32.mrf.mxu0
        %v2142 = vadd.f32 %v1848, %v2141
        %2143 = vdwg.mxu0
        %2144 = vmatpush.bf16.msra.mxu0 0
        %2145 = vmatpush.bf16.msra.mxu0 0
        %2146 = vmatpush.bf16.msra.mxu0 0
        %2147 = vmatpush.bf16.msra.mxu0 0
        %2148 = vmatpush.bf16.msra.mxu0 %v1787
        %2149 = vmatpush.bf16.msra.mxu0 %v1771
        %2150 = vmatpush.bf16.msra.mxu0 %v1755
        %2151 = vmatpush.bf16.msra.mxu0 %v1739
        %2152 = vmatmul.bf16.gmra.mxu0 %v1872
        %v2153 = vpop.f32.mrf.mxu0
        %v2154 = vadd.f32 %v1813, %v2153
        %v2155 = vpop.f32.mrf.mxu0
        %v2156 = vadd.f32 %v1818, %v2155
        %2157 = vmatmul.bf16.gmra.mxu0 %v1875
        %v2158 = vpop.f32.mrf.mxu0
        %v2159 = vadd.f32 %v1823, %v2158
        %v2160 = vpop.f32.mrf.mxu0
        %v2161 = vadd.f32 %v1828, %v2160
        %2162 = vmatmul.bf16.gmra.mxu0 %v1878
        %v2163 = vpop.f32.mrf.mxu0
        %v2164 = vadd.f32 %v1833, %v2163
        %v2165 = vpop.f32.mrf.mxu0
        %v2166 = vadd.f32 %v1838, %v2165
        %2167 = vmatmul.bf16.gmra.mxu0 %v1881
        %v2168 = vpop.f32.mrf.mxu0
        %v2169 = vadd.f32 %v1843, %v2168
        %v2170 = vpop.f32.mrf.mxu0
        %v2171 = vadd.f32 %v1848, %v2170
        %2172 = vdwg.mxu0
        %2173 = vmatpush.bf16.msra.mxu0 0
        %2174 = vmatpush.bf16.msra.mxu0 0
        %2175 = vmatpush.bf16.msra.mxu0 0
        %2176 = vmatpush.bf16.msra.mxu0 0
        %2177 = vmatpush.bf16.msra.mxu0 %v1788
        %2178 = vmatpush.bf16.msra.mxu0 %v1772
        %2179 = vmatpush.bf16.msra.mxu0 %v1756
        %2180 = vmatpush.bf16.msra.mxu0 %v1740
        %2181 = vmatmul.bf16.gmra.mxu0 %v1872
        %v2182 = vpop.f32.mrf.mxu0
        %v2183 = vadd.f32 %v1813, %v2182
        %v2184 = vpop.f32.mrf.mxu0
        %v2185 = vadd.f32 %v1818, %v2184
        %2186 = vmatmul.bf16.gmra.mxu0 %v1875
        %v2187 = vpop.f32.mrf.mxu0
        %v2188 = vadd.f32 %v1823, %v2187
        %v2189 = vpop.f32.mrf.mxu0
        %v2190 = vadd.f32 %v1828, %v2189
        %2191 = vmatmul.bf16.gmra.mxu0 %v1878
        %v2192 = vpop.f32.mrf.mxu0
        %v2193 = vadd.f32 %v1833, %v2192
        %v2194 = vpop.f32.mrf.mxu0
        %v2195 = vadd.f32 %v1838, %v2194
        %2196 = vmatmul.bf16.gmra.mxu0 %v1881
        %v2197 = vpop.f32.mrf.mxu0
        %v2198 = vadd.f32 %v1843, %v2197
        %v2199 = vpop.f32.mrf.mxu0
        %v2200 = vadd.f32 %v1848, %v2199
        %2201 = vdwg.mxu0
        %2202 = vmatpush.bf16.msra.mxu0 0
        %2203 = vmatpush.bf16.msra.mxu0 0
        %2204 = vmatpush.bf16.msra.mxu0 0
        %2205 = vmatpush.bf16.msra.mxu0 0
        %2206 = vmatpush.bf16.msra.mxu0 %v1789
        %2207 = vmatpush.bf16.msra.mxu0 %v1773
        %2208 = vmatpush.bf16.msra.mxu0 %v1757
        %2209 = vmatpush.bf16.msra.mxu0 %v1741
        %2210 = vmatmul.bf16.gmra.mxu0 %v1872
        %v2211 = vpop.f32.mrf.mxu0
        %v2212 = vadd.f32 %v1813, %v2211
        %v2213 = vpop.f32.mrf.mxu0
        %v2214 = vadd.f32 %v1818, %v2213
        %2215 = vmatmul.bf16.gmra.mxu0 %v1875
        %v2216 = vpop.f32.mrf.mxu0
        %v2217 = vadd.f32 %v1823, %v2216
        %v2218 = vpop.f32.mrf.mxu0
        %v2219 = vadd.f32 %v1828, %v2218
        %2220 = vmatmul.bf16.gmra.mxu0 %v1878
        %v2221 = vpop.f32.mrf.mxu0
        %v2222 = vadd.f32 %v1833, %v2221
        %v2223 = vpop.f32.mrf.mxu0
        %v2224 = vadd.f32 %v1838, %v2223
        %2225 = vmatmul.bf16.gmra.mxu0 %v1881
        %v2226 = vpop.f32.mrf.mxu0
        %v2227 = vadd.f32 %v1843, %v2226
        %v2228 = vpop.f32.mrf.mxu0
        %v2229 = vadd.f32 %v1848, %v2228
        %2230 = vdwg.mxu0
        %2231 = vmatpush.bf16.msra.mxu0 0
        %2232 = vmatpush.bf16.msra.mxu0 0
        %2233 = vmatpush.bf16.msra.mxu0 0
        %2234 = vmatpush.bf16.msra.mxu0 0
        %2235 = vmatpush.bf16.msra.mxu0 %v1790
        %2236 = vmatpush.bf16.msra.mxu0 %v1774
        %2237 = vmatpush.bf16.msra.mxu0 %v1758
        %2238 = vmatpush.bf16.msra.mxu0 %v1742
        %2239 = vmatmul.bf16.gmra.mxu0 %v1872
        %v2240 = vpop.f32.mrf.mxu0
        %v2241 = vadd.f32 %v1813, %v2240
        %v2242 = vpop.f32.mrf.mxu0
        %v2243 = vadd.f32 %v1818, %v2242
        %2244 = vmatmul.bf16.gmra.mxu0 %v1875
        %v2245 = vpop.f32.mrf.mxu0
        %v2246 = vadd.f32 %v1823, %v2245
        %v2247 = vpop.f32.mrf.mxu0
        %v2248 = vadd.f32 %v1828, %v2247
        %2249 = vmatmul.bf16.gmra.mxu0 %v1878
        %v2250 = vpop.f32.mrf.mxu0
        %v2251 = vadd.f32 %v1833, %v2250
        %v2252 = vpop.f32.mrf.mxu0
        %v2253 = vadd.f32 %v1838, %v2252
        %2254 = vmatmul.bf16.gmra.mxu0 %v1881
        %v2255 = vpop.f32.mrf.mxu0
        %v2256 = vadd.f32 %v1843, %v2255
        %v2257 = vpop.f32.mrf.mxu0
        %v2258 = vadd.f32 %v1848, %v2257
        %2259 = vdwg.mxu0
        %2260 = vmatpush.bf16.msra.mxu0 0
        %2261 = vmatpush.bf16.msra.mxu0 0
        %2262 = vmatpush.bf16.msra.mxu0 0
        %2263 = vmatpush.bf16.msra.mxu0 0
        %2264 = vmatpush.bf16.msra.mxu0 %v1791
        %2265 = vmatpush.bf16.msra.mxu0 %v1775
        %2266 = vmatpush.bf16.msra.mxu0 %v1759
        %2267 = vmatpush.bf16.msra.mxu0 %v1743
        %2268 = vmatmul.bf16.gmra.mxu0 %v1872
        %v2269 = vpop.f32.mrf.mxu0
        %v2270 = vadd.f32 %v1813, %v2269
        %v2271 = vpop.f32.mrf.mxu0
        %v2272 = vadd.f32 %v1818, %v2271
        %2273 = vmatmul.bf16.gmra.mxu0 %v1875
        %v2274 = vpop.f32.mrf.mxu0
        %v2275 = vadd.f32 %v1823, %v2274
        %v2276 = vpop.f32.mrf.mxu0
        %v2277 = vadd.f32 %v1828, %v2276
        %2278 = vmatmul.bf16.gmra.mxu0 %v1878
        %v2279 = vpop.f32.mrf.mxu0
        %v2280 = vadd.f32 %v1833, %v2279
        %v2281 = vpop.f32.mrf.mxu0
        %v2282 = vadd.f32 %v1838, %v2281
        %2283 = vmatmul.bf16.gmra.mxu0 %v1881
        %v2284 = vpop.f32.mrf.mxu0
        %v2285 = vadd.f32 %v1843, %v2284
        %v2286 = vpop.f32.mrf.mxu0
        %v2287 = vadd.f32 %v1848, %v2286
        %2288 = vdwg.mxu0
        %2289 = vmatpush.bf16.msra.mxu0 0
        %2290 = vmatpush.bf16.msra.mxu0 0
        %2291 = vmatpush.bf16.msra.mxu0 0
        %2292 = vmatpush.bf16.msra.mxu0 0
        %2293 = vmatpush.bf16.msra.mxu0 %v1792
        %2294 = vmatpush.bf16.msra.mxu0 %v1776
        %2295 = vmatpush.bf16.msra.mxu0 %v1760
        %2296 = vmatpush.bf16.msra.mxu0 %v1744
        %2297 = vmatmul.bf16.gmra.mxu0 %v1872
        %v2298 = vpop.f32.mrf.mxu0
        %v2299 = vadd.f32 %v1813, %v2298
        %v2300 = vpop.f32.mrf.mxu0
        %v2301 = vadd.f32 %v1818, %v2300
        %2302 = vmatmul.bf16.gmra.mxu0 %v1875
        %v2303 = vpop.f32.mrf.mxu0
        %v2304 = vadd.f32 %v1823, %v2303
        %v2305 = vpop.f32.mrf.mxu0
        %v2306 = vadd.f32 %v1828, %v2305
        %2307 = vmatmul.bf16.gmra.mxu0 %v1878
        %v2308 = vpop.f32.mrf.mxu0
        %v2309 = vadd.f32 %v1833, %v2308
        %v2310 = vpop.f32.mrf.mxu0
        %v2311 = vadd.f32 %v1838, %v2310
        %2312 = vmatmul.bf16.gmra.mxu0 %v1881
        %v2313 = vpop.f32.mrf.mxu0
        %v2314 = vadd.f32 %v1843, %v2313
        %v2315 = vpop.f32.mrf.mxu0
        %v2316 = vadd.f32 %v1848, %v2315
        %2317 = vdwg.mxu0
        %2318 = vmatpush.bf16.msra.mxu0 0
        %2319 = vmatpush.bf16.msra.mxu0 0
        %2320 = vmatpush.bf16.msra.mxu0 0
        %2321 = vmatpush.bf16.msra.mxu0 0
        %2322 = vmatpush.bf16.msra.mxu0 %v1793
        %2323 = vmatpush.bf16.msra.mxu0 %v1777
        %2324 = vmatpush.bf16.msra.mxu0 %v1761
        %2325 = vmatpush.bf16.msra.mxu0 %v1745
        %2326 = vmatmul.bf16.gmra.mxu0 %v1872
        %v2327 = vpop.f32.mrf.mxu0
        %v2328 = vadd.f32 %v1813, %v2327
        %v2329 = vpop.f32.mrf.mxu0
        %v2330 = vadd.f32 %v1818, %v2329
        %2331 = vmatmul.bf16.gmra.mxu0 %v1875
        %v2332 = vpop.f32.mrf.mxu0
        %v2333 = vadd.f32 %v1823, %v2332
        %v2334 = vpop.f32.mrf.mxu0
        %v2335 = vadd.f32 %v1828, %v2334
        %2336 = vmatmul.bf16.gmra.mxu0 %v1878
        %v2337 = vpop.f32.mrf.mxu0
        %v2338 = vadd.f32 %v1833, %v2337
        %v2339 = vpop.f32.mrf.mxu0
        %v2340 = vadd.f32 %v1838, %v2339
        %2341 = vmatmul.bf16.gmra.mxu0 %v1881
        %v2342 = vpop.f32.mrf.mxu0
        %v2343 = vadd.f32 %v1843, %v2342
        %v2344 = vpop.f32.mrf.mxu0
        %v2345 = vadd.f32 %v1848, %v2344
        %2346 = vdwg.mxu0
        %v2347 = vmax.f32 %v1893, 0.0
        %v2348 = vmax.f32 %v1922, 0.0
        %v2349 = vmax.f32 %v1951, 0.0
        %v2350 = vmax.f32 %v1980, 0.0
        %v2351 = vmax.f32 %v2009, 0.0
        %v2352 = vmax.f32 %v2038, 0.0
        %v2353 = vmax.f32 %v2067, 0.0
        %v2354 = vmax.f32 %v2096, 0.0
        %v2355 = vmax.f32 %v2125, 0.0
        %v2356 = vmax.f32 %v2154, 0.0
        %v2357 = vmax.f32 %v2183, 0.0
        %v2358 = vmax.f32 %v2212, 0.0
        %v2359 = vmax.f32 %v2241, 0.0
        %v2360 = vmax.f32 %v2270, 0.0
        %v2361 = vmax.f32 %v2299, 0.0
        %v2362 = vmax.f32 %v2328, 0.0
        %v2363 = vmax.f32 %v1895, 0.0
        %v2364 = vmax.f32 %v1924, 0.0
        %v2365 = vmax.f32 %v1953, 0.0
        %v2366 = vmax.f32 %v1982, 0.0
        %v2367 = vmax.f32 %v2011, 0.0
        %v2368 = vmax.f32 %v2040, 0.0
        %v2369 = vmax.f32 %v2069, 0.0
        %v2370 = vmax.f32 %v2098, 0.0
        %v2371 = vmax.f32 %v2127, 0.0
        %v2372 = vmax.f32 %v2156, 0.0
        %v2373 = vmax.f32 %v2185, 0.0
        %v2374 = vmax.f32 %v2214, 0.0
        %v2375 = vmax.f32 %v2243, 0.0
        %v2376 = vmax.f32 %v2272, 0.0
        %v2377 = vmax.f32 %v2301, 0.0
        %v2378 = vmax.f32 %v2330, 0.0
        %v2379 = vmax.f32 %v1898, 0.0
        %v2380 = vmax.f32 %v1927, 0.0
        %v2381 = vmax.f32 %v1956, 0.0
        %v2382 = vmax.f32 %v1985, 0.0
        %v2383 = vmax.f32 %v2014, 0.0
        %v2384 = vmax.f32 %v2043, 0.0
        %v2385 = vmax.f32 %v2072, 0.0
        %v2386 = vmax.f32 %v2101, 0.0
        %v2387 = vmax.f32 %v2130, 0.0
        %v2388 = vmax.f32 %v2159, 0.0
        %v2389 = vmax.f32 %v2188, 0.0
        %v2390 = vmax.f32 %v2217, 0.0
        %v2391 = vmax.f32 %v2246, 0.0
        %v2392 = vmax.f32 %v2275, 0.0
        %v2393 = vmax.f32 %v2304, 0.0
        %v2394 = vmax.f32 %v2333, 0.0
        %v2395 = vmax.f32 %v1900, 0.0
        %v2396 = vmax.f32 %v1929, 0.0
        %v2397 = vmax.f32 %v1958, 0.0
        %v2398 = vmax.f32 %v1987, 0.0
        %v2399 = vmax.f32 %v2016, 0.0
        %v2400 = vmax.f32 %v2045, 0.0
        %v2401 = vmax.f32 %v2074, 0.0
        %v2402 = vmax.f32 %v2103, 0.0
        %v2403 = vmax.f32 %v2132, 0.0
        %v2404 = vmax.f32 %v2161, 0.0
        %v2405 = vmax.f32 %v2190, 0.0
        %v2406 = vmax.f32 %v2219, 0.0
        %v2407 = vmax.f32 %v2248, 0.0
        %v2408 = vmax.f32 %v2277, 0.0
        %v2409 = vmax.f32 %v2306, 0.0
        %v2410 = vmax.f32 %v2335, 0.0
        %v2411 = vmax.f32 %v1903, 0.0
        %v2412 = vmax.f32 %v1932, 0.0
        %v2413 = vmax.f32 %v1961, 0.0
        %v2414 = vmax.f32 %v1990, 0.0
        %v2415 = vmax.f32 %v2019, 0.0
        %v2416 = vmax.f32 %v2048, 0.0
        %v2417 = vmax.f32 %v2077, 0.0
        %v2418 = vmax.f32 %v2106, 0.0
        %v2419 = vmax.f32 %v2135, 0.0
        %v2420 = vmax.f32 %v2164, 0.0
        %v2421 = vmax.f32 %v2193, 0.0
        %v2422 = vmax.f32 %v2222, 0.0
        %v2423 = vmax.f32 %v2251, 0.0
        %v2424 = vmax.f32 %v2280, 0.0
        %v2425 = vmax.f32 %v2309, 0.0
        %v2426 = vmax.f32 %v2338, 0.0
        %v2427 = vmax.f32 %v1905, 0.0
        %v2428 = vmax.f32 %v1934, 0.0
        %v2429 = vmax.f32 %v1963, 0.0
        %v2430 = vmax.f32 %v1992, 0.0
        %v2431 = vmax.f32 %v2021, 0.0
        %v2432 = vmax.f32 %v2050, 0.0
        %v2433 = vmax.f32 %v2079, 0.0
        %v2434 = vmax.f32 %v2108, 0.0
        %v2435 = vmax.f32 %v2137, 0.0
        %v2436 = vmax.f32 %v2166, 0.0
        %v2437 = vmax.f32 %v2195, 0.0
        %v2438 = vmax.f32 %v2224, 0.0
        %v2439 = vmax.f32 %v2253, 0.0
        %v2440 = vmax.f32 %v2282, 0.0
        %v2441 = vmax.f32 %v2311, 0.0
        %v2442 = vmax.f32 %v2340, 0.0
        %v2443 = vmax.f32 %v1908, 0.0
        %v2444 = vmax.f32 %v1937, 0.0
        %v2445 = vmax.f32 %v1966, 0.0
        %v2446 = vmax.f32 %v1995, 0.0
        %v2447 = vmax.f32 %v2024, 0.0
        %v2448 = vmax.f32 %v2053, 0.0
        %v2449 = vmax.f32 %v2082, 0.0
        %v2450 = vmax.f32 %v2111, 0.0
        %v2451 = vmax.f32 %v2140, 0.0
        %v2452 = vmax.f32 %v2169, 0.0
        %v2453 = vmax.f32 %v2198, 0.0
        %v2454 = vmax.f32 %v2227, 0.0
        %v2455 = vmax.f32 %v2256, 0.0
        %v2456 = vmax.f32 %v2285, 0.0
        %v2457 = vmax.f32 %v2314, 0.0
        %v2458 = vmax.f32 %v2343, 0.0
        %v2459 = vmax.f32 %v1910, 0.0
        %v2460 = vmax.f32 %v1939, 0.0
        %v2461 = vmax.f32 %v1968, 0.0
        %v2462 = vmax.f32 %v1997, 0.0
        %v2463 = vmax.f32 %v2026, 0.0
        %v2464 = vmax.f32 %v2055, 0.0
        %v2465 = vmax.f32 %v2084, 0.0
        %v2466 = vmax.f32 %v2113, 0.0
        %v2467 = vmax.f32 %v2142, 0.0
        %v2468 = vmax.f32 %v2171, 0.0
        %v2469 = vmax.f32 %v2200, 0.0
        %v2470 = vmax.f32 %v2229, 0.0
        %v2471 = vmax.f32 %v2258, 0.0
        %v2472 = vmax.f32 %v2287, 0.0
        %v2473 = vmax.f32 %v2316, 0.0
        %v2474 = vmax.f32 %v2345, 0.0
        %v2475 = vpack.c.bf16 %v2363, %v2347
        %v2476 = vpack.c.bf16 %v2364, %v2348
        %v2477 = vpack.c.bf16 %v2365, %v2349
        %v2478 = vpack.c.bf16 %v2366, %v2350
        %v2479 = vpack.c.bf16 %v2367, %v2351
        %v2480 = vpack.c.bf16 %v2368, %v2352
        %v2481 = vpack.c.bf16 %v2369, %v2353
        %v2482 = vpack.c.bf16 %v2370, %v2354
        %v2483 = vpack.c.bf16 %v2371, %v2355
        %v2484 = vpack.c.bf16 %v2372, %v2356
        %v2485 = vpack.c.bf16 %v2373, %v2357
        %v2486 = vpack.c.bf16 %v2374, %v2358
        %v2487 = vpack.c.bf16 %v2375, %v2359
        %v2488 = vpack.c.bf16 %v2376, %v2360
        %v2489 = vpack.c.bf16 %v2377, %v2361
        %v2490 = vpack.c.bf16 %v2378, %v2362
        %v2491 = vpack.c.bf16 %v2395, %v2379
        %v2492 = vpack.c.bf16 %v2396, %v2380
        %v2493 = vpack.c.bf16 %v2397, %v2381
        %v2494 = vpack.c.bf16 %v2398, %v2382
        %v2495 = vpack.c.bf16 %v2399, %v2383
        %v2496 = vpack.c.bf16 %v2400, %v2384
        %v2497 = vpack.c.bf16 %v2401, %v2385
        %v2498 = vpack.c.bf16 %v2402, %v2386
        %v2499 = vpack.c.bf16 %v2403, %v2387
        %v2500 = vpack.c.bf16 %v2404, %v2388
        %v2501 = vpack.c.bf16 %v2405, %v2389
        %v2502 = vpack.c.bf16 %v2406, %v2390
        %v2503 = vpack.c.bf16 %v2407, %v2391
        %v2504 = vpack.c.bf16 %v2408, %v2392
        %v2505 = vpack.c.bf16 %v2409, %v2393
        %v2506 = vpack.c.bf16 %v2410, %v2394
        %v2507 = vpack.c.bf16 %v2427, %v2411
        %v2508 = vpack.c.bf16 %v2428, %v2412
        %v2509 = vpack.c.bf16 %v2429, %v2413
        %v2510 = vpack.c.bf16 %v2430, %v2414
        %v2511 = vpack.c.bf16 %v2431, %v2415
        %v2512 = vpack.c.bf16 %v2432, %v2416
        %v2513 = vpack.c.bf16 %v2433, %v2417
        %v2514 = vpack.c.bf16 %v2434, %v2418
        %v2515 = vpack.c.bf16 %v2435, %v2419
        %v2516 = vpack.c.bf16 %v2436, %v2420
        %v2517 = vpack.c.bf16 %v2437, %v2421
        %v2518 = vpack.c.bf16 %v2438, %v2422
        %v2519 = vpack.c.bf16 %v2439, %v2423
        %v2520 = vpack.c.bf16 %v2440, %v2424
        %v2521 = vpack.c.bf16 %v2441, %v2425
        %v2522 = vpack.c.bf16 %v2442, %v2426
        %v2523 = vpack.c.bf16 %v2459, %v2443
        %v2524 = vpack.c.bf16 %v2460, %v2444
        %v2525 = vpack.c.bf16 %v2461, %v2445
        %v2526 = vpack.c.bf16 %v2462, %v2446
        %v2527 = vpack.c.bf16 %v2463, %v2447
        %v2528 = vpack.c.bf16 %v2464, %v2448
        %v2529 = vpack.c.bf16 %v2465, %v2449
        %v2530 = vpack.c.bf16 %v2466, %v2450
        %v2531 = vpack.c.bf16 %v2467, %v2451
        %v2532 = vpack.c.bf16 %v2468, %v2452
        %v2533 = vpack.c.bf16 %v2469, %v2453
        %v2534 = vpack.c.bf16 %v2470, %v2454
        %v2535 = vpack.c.bf16 %v2471, %v2455
        %v2536 = vpack.c.bf16 %v2472, %v2456
        %v2537 = vpack.c.bf16 %v2473, %v2457
        %v2538 = vpack.c.bf16 %v2474, %v2458
        %v2539 = vld [vmem:[%s5] sm:$0xf]
        %v2540 = vld [vmem:[%s5 + $0x4] sm:$0xf]
        %v2541 = vld [vmem:[%s6] sm:$0xff]
        %v2542 = vld [vmem:[%s6 + $0x8] sm:$0xff]
        %2544 = vset.pattern.permute.xlu0 0
        %2545 = vperm.xlu0 %2544, %v2541
        %v2546 = vpop.permute.xlu0 %2545
        %2549 = vset.pattern.permute.xlu0 0
        %2550 = vperm.xlu0 %2549, %v2542
        %v2551 = vpop.permute.xlu0 %2550
        %v2555 = vunpack.c.l.b16 %v2539
        %v2556 = vunpack.c.l.b16 %v2540
        %v2557 = vpack.c.b16 %v2556, %v2555
        %v2559 = vsel %vm1870, %v2557, 0
        %2561 = vmatpush.bf16.msra.mxu0 0
        %2562 = vmatpush.bf16.msra.mxu0 0
        %2563 = vmatpush.bf16.msra.mxu0 0
        %2564 = vmatpush.bf16.msra.mxu0 0
        %2565 = vmatpush.bf16.msra.mxu0 %v2523
        %2566 = vmatpush.bf16.msra.mxu0 %v2507
        %2567 = vmatpush.bf16.msra.mxu0 %v2491
        %2568 = vmatpush.bf16.msra.mxu0 %v2475
        %2569 = vmatmul.bf16.gmra.mxu0 %v2559
        %v2570 = vpop.f32.mrf.mxu0
        %v2571 = vadd.f32 %v2546, %v2570
        %v2572 = vpop.f32.mrf.mxu0
        %v2573 = vadd.f32 %v2551, %v2572
        %2574 = vdwg.mxu0
        %2575 = vmatpush.bf16.msra.mxu0 0
        %2576 = vmatpush.bf16.msra.mxu0 0
        %2577 = vmatpush.bf16.msra.mxu0 0
        %2578 = vmatpush.bf16.msra.mxu0 0
        %2579 = vmatpush.bf16.msra.mxu0 %v2524
        %2580 = vmatpush.bf16.msra.mxu0 %v2508
        %2581 = vmatpush.bf16.msra.mxu0 %v2492
        %2582 = vmatpush.bf16.msra.mxu0 %v2476
        %2583 = vmatmul.bf16.gmra.mxu0 %v2559
        %v2584 = vpop.f32.mrf.mxu0
        %v2585 = vadd.f32 %v2546, %v2584
        %v2586 = vpop.f32.mrf.mxu0
        %v2587 = vadd.f32 %v2551, %v2586
        %2588 = vdwg.mxu0
        %2589 = vmatpush.bf16.msra.mxu0 0
        %2590 = vmatpush.bf16.msra.mxu0 0
        %2591 = vmatpush.bf16.msra.mxu0 0
        %2592 = vmatpush.bf16.msra.mxu0 0
        %2593 = vmatpush.bf16.msra.mxu0 %v2525
        %2594 = vmatpush.bf16.msra.mxu0 %v2509
        %2595 = vmatpush.bf16.msra.mxu0 %v2493
        %2596 = vmatpush.bf16.msra.mxu0 %v2477
        %2597 = vmatmul.bf16.gmra.mxu0 %v2559
        %v2598 = vpop.f32.mrf.mxu0
        %v2599 = vadd.f32 %v2546, %v2598
        %v2600 = vpop.f32.mrf.mxu0
        %v2601 = vadd.f32 %v2551, %v2600
        %2602 = vdwg.mxu0
        %2603 = vmatpush.bf16.msra.mxu0 0
        %2604 = vmatpush.bf16.msra.mxu0 0
        %2605 = vmatpush.bf16.msra.mxu0 0
        %2606 = vmatpush.bf16.msra.mxu0 0
        %2607 = vmatpush.bf16.msra.mxu0 %v2526
        %2608 = vmatpush.bf16.msra.mxu0 %v2510
        %2609 = vmatpush.bf16.msra.mxu0 %v2494
        %2610 = vmatpush.bf16.msra.mxu0 %v2478
        %2611 = vmatmul.bf16.gmra.mxu0 %v2559
        %v2612 = vpop.f32.mrf.mxu0
        %v2613 = vadd.f32 %v2546, %v2612
        %v2614 = vpop.f32.mrf.mxu0
        %v2615 = vadd.f32 %v2551, %v2614
        %2616 = vdwg.mxu0
        %2617 = vmatpush.bf16.msra.mxu0 0
        %2618 = vmatpush.bf16.msra.mxu0 0
        %2619 = vmatpush.bf16.msra.mxu0 0
        %2620 = vmatpush.bf16.msra.mxu0 0
        %2621 = vmatpush.bf16.msra.mxu0 %v2527
        %2622 = vmatpush.bf16.msra.mxu0 %v2511
        %2623 = vmatpush.bf16.msra.mxu0 %v2495
        %2624 = vmatpush.bf16.msra.mxu0 %v2479
        %2625 = vmatmul.bf16.gmra.mxu0 %v2559
        %v2626 = vpop.f32.mrf.mxu0
        %v2627 = vadd.f32 %v2546, %v2626
        %v2628 = vpop.f32.mrf.mxu0
        %v2629 = vadd.f32 %v2551, %v2628
        %2630 = vdwg.mxu0
        %2631 = vmatpush.bf16.msra.mxu0 0
        %2632 = vmatpush.bf16.msra.mxu0 0
        %2633 = vmatpush.bf16.msra.mxu0 0
        %2634 = vmatpush.bf16.msra.mxu0 0
        %2635 = vmatpush.bf16.msra.mxu0 %v2528
        %2636 = vmatpush.bf16.msra.mxu0 %v2512
        %2637 = vmatpush.bf16.msra.mxu0 %v2496
        %2638 = vmatpush.bf16.msra.mxu0 %v2480
        %2639 = vmatmul.bf16.gmra.mxu0 %v2559
        %v2640 = vpop.f32.mrf.mxu0
        %v2641 = vadd.f32 %v2546, %v2640
        %v2642 = vpop.f32.mrf.mxu0
        %v2643 = vadd.f32 %v2551, %v2642
        %2644 = vdwg.mxu0
        %2645 = vmatpush.bf16.msra.mxu0 0
        %2646 = vmatpush.bf16.msra.mxu0 0
        %2647 = vmatpush.bf16.msra.mxu0 0
        %2648 = vmatpush.bf16.msra.mxu0 0
        %2649 = vmatpush.bf16.msra.mxu0 %v2529
        %2650 = vmatpush.bf16.msra.mxu0 %v2513
        %2651 = vmatpush.bf16.msra.mxu0 %v2497
        %2652 = vmatpush.bf16.msra.mxu0 %v2481
        %2653 = vmatmul.bf16.gmra.mxu0 %v2559
        %v2654 = vpop.f32.mrf.mxu0
        %v2655 = vadd.f32 %v2546, %v2654
        %v2656 = vpop.f32.mrf.mxu0
        %v2657 = vadd.f32 %v2551, %v2656
        %2658 = vdwg.mxu0
        %2659 = vmatpush.bf16.msra.mxu0 0
        %2660 = vmatpush.bf16.msra.mxu0 0
        %2661 = vmatpush.bf16.msra.mxu0 0
        %2662 = vmatpush.bf16.msra.mxu0 0
        %2663 = vmatpush.bf16.msra.mxu0 %v2530
        %2664 = vmatpush.bf16.msra.mxu0 %v2514
        %2665 = vmatpush.bf16.msra.mxu0 %v2498
        %2666 = vmatpush.bf16.msra.mxu0 %v2482
        %2667 = vmatmul.bf16.gmra.mxu0 %v2559
        %v2668 = vpop.f32.mrf.mxu0
        %v2669 = vadd.f32 %v2546, %v2668
        %v2670 = vpop.f32.mrf.mxu0
        %v2671 = vadd.f32 %v2551, %v2670
        %2672 = vdwg.mxu0
        %2673 = vmatpush.bf16.msra.mxu0 0
        %2674 = vmatpush.bf16.msra.mxu0 0
        %2675 = vmatpush.bf16.msra.mxu0 0
        %2676 = vmatpush.bf16.msra.mxu0 0
        %2677 = vmatpush.bf16.msra.mxu0 %v2531
        %2678 = vmatpush.bf16.msra.mxu0 %v2515
        %2679 = vmatpush.bf16.msra.mxu0 %v2499
        %2680 = vmatpush.bf16.msra.mxu0 %v2483
        %2681 = vmatmul.bf16.gmra.mxu0 %v2559
        %v2682 = vpop.f32.mrf.mxu0
        %v2683 = vadd.f32 %v2546, %v2682
        %v2684 = vpop.f32.mrf.mxu0
        %v2685 = vadd.f32 %v2551, %v2684
        %2686 = vdwg.mxu0
        %2687 = vmatpush.bf16.msra.mxu0 0
        %2688 = vmatpush.bf16.msra.mxu0 0
        %2689 = vmatpush.bf16.msra.mxu0 0
        %2690 = vmatpush.bf16.msra.mxu0 0
        %2691 = vmatpush.bf16.msra.mxu0 %v2532
        %2692 = vmatpush.bf16.msra.mxu0 %v2516
        %2693 = vmatpush.bf16.msra.mxu0 %v2500
        %2694 = vmatpush.bf16.msra.mxu0 %v2484
        %2695 = vmatmul.bf16.gmra.mxu0 %v2559
        %v2696 = vpop.f32.mrf.mxu0
        %v2697 = vadd.f32 %v2546, %v2696
        %v2698 = vpop.f32.mrf.mxu0
        %v2699 = vadd.f32 %v2551, %v2698
        %2700 = vdwg.mxu0
        %2701 = vmatpush.bf16.msra.mxu0 0
        %2702 = vmatpush.bf16.msra.mxu0 0
        %2703 = vmatpush.bf16.msra.mxu0 0
        %2704 = vmatpush.bf16.msra.mxu0 0
        %2705 = vmatpush.bf16.msra.mxu0 %v2533
        %2706 = vmatpush.bf16.msra.mxu0 %v2517
        %2707 = vmatpush.bf16.msra.mxu0 %v2501
        %2708 = vmatpush.bf16.msra.mxu0 %v2485
        %2709 = vmatmul.bf16.gmra.mxu0 %v2559
        %v2710 = vpop.f32.mrf.mxu0
        %v2711 = vadd.f32 %v2546, %v2710
        %v2712 = vpop.f32.mrf.mxu0
        %v2713 = vadd.f32 %v2551, %v2712
        %2714 = vdwg.mxu0
        %2715 = vmatpush.bf16.msra.mxu0 0
        %2716 = vmatpush.bf16.msra.mxu0 0
        %2717 = vmatpush.bf16.msra.mxu0 0
        %2718 = vmatpush.bf16.msra.mxu0 0
        %2719 = vmatpush.bf16.msra.mxu0 %v2534
        %2720 = vmatpush.bf16.msra.mxu0 %v2518
        %2721 = vmatpush.bf16.msra.mxu0 %v2502
        %2722 = vmatpush.bf16.msra.mxu0 %v2486
        %2723 = vmatmul.bf16.gmra.mxu0 %v2559
        %v2724 = vpop.f32.mrf.mxu0
        %v2725 = vadd.f32 %v2546, %v2724
        %v2726 = vpop.f32.mrf.mxu0
        %v2727 = vadd.f32 %v2551, %v2726
        %2728 = vdwg.mxu0
        %2729 = vmatpush.bf16.msra.mxu0 0
        %2730 = vmatpush.bf16.msra.mxu0 0
        %2731 = vmatpush.bf16.msra.mxu0 0
        %2732 = vmatpush.bf16.msra.mxu0 0
        %2733 = vmatpush.bf16.msra.mxu0 %v2535
        %2734 = vmatpush.bf16.msra.mxu0 %v2519
        %2735 = vmatpush.bf16.msra.mxu0 %v2503
        %2736 = vmatpush.bf16.msra.mxu0 %v2487
        %2737 = vmatmul.bf16.gmra.mxu0 %v2559
        %v2738 = vpop.f32.mrf.mxu0
        %v2739 = vadd.f32 %v2546, %v2738
        %v2740 = vpop.f32.mrf.mxu0
        %v2741 = vadd.f32 %v2551, %v2740
        %2742 = vdwg.mxu0
        %2743 = vmatpush.bf16.msra.mxu0 0
        %2744 = vmatpush.bf16.msra.mxu0 0
        %2745 = vmatpush.bf16.msra.mxu0 0
        %2746 = vmatpush.bf16.msra.mxu0 0
        %2747 = vmatpush.bf16.msra.mxu0 %v2536
        %2748 = vmatpush.bf16.msra.mxu0 %v2520
        %2749 = vmatpush.bf16.msra.mxu0 %v2504
        %2750 = vmatpush.bf16.msra.mxu0 %v2488
        %2751 = vmatmul.bf16.gmra.mxu0 %v2559
        %v2752 = vpop.f32.mrf.mxu0
        %v2753 = vadd.f32 %v2546, %v2752
        %v2754 = vpop.f32.mrf.mxu0
        %v2755 = vadd.f32 %v2551, %v2754
        %2756 = vdwg.mxu0
        %2757 = vmatpush.bf16.msra.mxu0 0
        %2758 = vmatpush.bf16.msra.mxu0 0
        %2759 = vmatpush.bf16.msra.mxu0 0
        %2760 = vmatpush.bf16.msra.mxu0 0
        %2761 = vmatpush.bf16.msra.mxu0 %v2537
        %2762 = vmatpush.bf16.msra.mxu0 %v2521
        %2763 = vmatpush.bf16.msra.mxu0 %v2505
        %2764 = vmatpush.bf16.msra.mxu0 %v2489
        %2765 = vmatmul.bf16.gmra.mxu0 %v2559
        %v2766 = vpop.f32.mrf.mxu0
        %v2767 = vadd.f32 %v2546, %v2766
        %v2768 = vpop.f32.mrf.mxu0
        %v2769 = vadd.f32 %v2551, %v2768
        %2770 = vdwg.mxu0
        %2771 = vmatpush.bf16.msra.mxu0 0
        %2772 = vmatpush.bf16.msra.mxu0 0
        %2773 = vmatpush.bf16.msra.mxu0 0
        %2774 = vmatpush.bf16.msra.mxu0 0
        %2775 = vmatpush.bf16.msra.mxu0 %v2538
        %2776 = vmatpush.bf16.msra.mxu0 %v2522
        %2777 = vmatpush.bf16.msra.mxu0 %v2506
        %2778 = vmatpush.bf16.msra.mxu0 %v2490
        %2779 = vmatmul.bf16.gmra.mxu0 %v2559
        %v2780 = vpop.f32.mrf.mxu0
        %v2781 = vadd.f32 %v2546, %v2780
        %v2782 = vpop.f32.mrf.mxu0
        %v2783 = vadd.f32 %v2551, %v2782
        %2784 = vdwg.mxu0
        %2785 = vst [vmem:[%s272] sm:$0xff] %v2571
        %2786 = vst [vmem:[%s272 + $0x8] sm:$0xff] %v2585
        %2787 = vst [vmem:[%s272 + $0x10] sm:$0xff] %v2599
        %2788 = vst [vmem:[%s272 + $0x18] sm:$0xff] %v2613
        %2789 = vst [vmem:[%s272 + $0x20] sm:$0xff] %v2627
        %2790 = vst [vmem:[%s272 + $0x28] sm:$0xff] %v2641
        %2791 = vst [vmem:[%s272 + $0x30] sm:$0xff] %v2655
        %2792 = vst [vmem:[%s272 + $0x38] sm:$0xff] %v2669
        %2793 = vst [vmem:[%s272 + $0x40] sm:$0xff] %v2683
        %2794 = vst [vmem:[%s272 + $0x48] sm:$0xff] %v2697
        %2795 = vst [vmem:[%s272 + $0x50] sm:$0xff] %v2711
        %2796 = vst [vmem:[%s272 + $0x58] sm:$0xff] %v2725
        %2797 = vst [vmem:[%s272 + $0x60] sm:$0xff] %v2739
        %2798 = vst [vmem:[%s272 + $0x68] sm:$0xff] %v2753
        %2799 = vst [vmem:[%s272 + $0x70] sm:$0xff] %v2767
        %2800 = vst [vmem:[%s272 + $0x78] sm:$0xff] %v2781
        %2801 = vst [vmem:[%s272 + $0x80] sm:$0xff] %v2573
        %2802 = vst [vmem:[%s272 + $0x88] sm:$0xff] %v2587
        %2803 = vst [vmem:[%s272 + $0x90] sm:$0xff] %v2601
        %2804 = vst [vmem:[%s272 + $0x98] sm:$0xff] %v2615
        %2805 = vst [vmem:[%s272 + $0xa0] sm:$0xff] %v2629
        %2806 = vst [vmem:[%s272 + $0xa8] sm:$0xff] %v2643
        %2807 = vst [vmem:[%s272 + $0xb0] sm:$0xff] %v2657
        %2808 = vst [vmem:[%s272 + $0xb8] sm:$0xff] %v2671
        %2809 = vst [vmem:[%s272 + $0xc0] sm:$0xff] %v2685
        %2810 = vst [vmem:[%s272 + $0xc8] sm:$0xff] %v2699
        %2811 = vst [vmem:[%s272 + $0xd0] sm:$0xff] %v2713
        %2812 = vst [vmem:[%s272 + $0xd8] sm:$0xff] %v2727
        %2813 = vst [vmem:[%s272 + $0xe0] sm:$0xff] %v2741
        %2814 = vst [vmem:[%s272 + $0xe8] sm:$0xff] %v2755
        %2815 = vst [vmem:[%s272 + $0xf0] sm:$0xff] %v2769
        %2816 = vst [vmem:[%s272 + $0xf8] sm:$0xff] %v2783
        %s2817 = sand.u32 %s181, 1
        %s2818 = scalar_lea.sflag [#allocation3], %s2817
        %s2819 = sand.u32 %s181, 1
        %s2820 = smul.addr %s2819, 256
        %s2821 = scalar_lea.vmem [#allocation2], %s2820
        // Predicated region
        $region49: #{tpu_custom_call.1} parent=47 // pred_check
          %p2822 = pneg %p191
        $region50: #{tpu_custom_call.1} parent=47 // pred_check_branch
          %2824 = sbr.rel (%p2822) target = $region52
        $region51: #{tpu_custom_call.1} parent=47 // pred_region
          %s2825 = smul.u32 16, %s21
          %2827 = vsyncadd %s2818, 0
          %s2828 = smul.addr %s2825, 8
          %s2829 = scalar_lea.hbm %s7, %s2828
          %s2830 = sshll.u32 %s2821, 4
          %s2831 = int_to_ptr.vmem [resolvable:$true] %s2830
          %s2832 = sshll.u32 %s2829, 4
          %s2833 = int_to_ptr.hbm [resolvable:$true] %s2832
          %2838 = dma.vmem_to_hbm [thread:$0]  %s2831, 4096, %s2833, %s2818, 2048, 4096, 128
        $region52: #{tpu_custom_call.1} parent=47 // pred_fallthru
          _
      $region48: #{tpu_custom_call.1} parent=5 // pred_fallthru
        _
      %p2839 = scmp.le.s32.totalorder 2, %s16
      // Predicated region
      $region53: #{tpu_custom_call.1} parent=5 // pred_check
        %p2840 = pneg %p2839
      $region54: #{tpu_custom_call.1} parent=5 // pred_check_branch
        %2842 = sbr.rel (%p2840) target = $region56
      $region55: #{tpu_custom_call.1} parent=5 // pred_region
        %s2843 = ssub.s32 %s16, 2
        // Predicated region
        $region57: #{tpu_custom_call.1} parent=55 // pred_check
          %p2844 = pneg %p197
        $region58: #{tpu_custom_call.1} parent=55 // pred_check_branch
          %2846 = sbr.rel (%p2844) target = $region60
        $region59: #{tpu_custom_call.1} parent=55 // pred_region
          %s2847 = sand.u32 %s182, 1
          %s2848 = scalar_lea.sflag [#allocation3], %s2847
          %s2849 = sand.u32 %s182, 1
          %s2850 = smul.addr %s2849, 256
          %s2851 = scalar_lea.vmem [#allocation2], %s2850
          %2853 = dma.done %s2848, 4096
        $region60: #{tpu_custom_call.1} parent=55 // pred_fallthru
          _
      $region56: #{tpu_custom_call.1} parent=5 // pred_fallthru
        _
    $region6: #{tpu_custom_call.1} parent=1 // loop_footer
      %s20 = sadd.s32 1, %s16
    $region7: #{tpu_custom_call.1} parent=1 // loop_footer_branch
      %15 = sbr.rel target = $region3
    $region8: #{tpu_custom_call.1} parent=1 // loop_exit
      _
    %2854 = vsyncpa [#allocation3], 1
    %s2855 = scalar_lea.sflag [#allocation3], 1
    %2856 = vsyncpa %s2855, 1

</llo_original>
